<compile_context>
chip_gen: v6e
topology: v6e:2x2x1
jax: 0.10.0
libtpu: 0.0.40
codegen_flags: <defaults>
</compile_context>

<pallas_src>
import math
import functools

import jax
import jax.numpy as jnp
from jax.experimental import pallas as pl
from jax.experimental.pallas import tpu as pltpu


def _gelu_tanh(x):
    c = math.sqrt(2.0 / math.pi)
    return 0.5 * x * (1.0 + jnp.tanh(c * (x + 0.044715 * x * x * x)))


def _layernorm(x, g, b, eps=1e-5):
    mu = jnp.mean(x, axis=-1, keepdims=True)
    var = jnp.mean((x - mu) ** 2, axis=-1, keepdims=True)
    return (x - mu) * jax.lax.rsqrt(var + eps) * g + b


def encoder_block_kernel(num_heads,
                         xq_ref, xfull_ref,
                         ln1g, ln1b,
                         wq, bq, wk, bk, wv, bv,
                         wp, bp,
                         ln2g, ln2b,
                         w1, b1, w2, b2,
                         o_ref):
    f32 = jnp.float32
    bf16 = jnp.bfloat16

    x_q = xq_ref[0].astype(f32)        # (Tq, D) query / residual tile
    x_all = xfull_ref[0].astype(f32)   # (S, D)  full sequence for K/V
    Tq, D = x_q.shape
    S = x_all.shape[0]
    hd = D // num_heads
    scale = 1.0 / math.sqrt(hd)

    # ---- LN1 (f32) ------------------------------------------------------
    g1 = ln1g[0]
    be1 = ln1b[0]
    xnq = _layernorm(x_q, g1, be1)          # (Tq, D)
    xna = _layernorm(x_all, g1, be1)        # (S, D)

    # ---- QKV projections: bf16 inputs, f32 accumulation -----------------
    q = jnp.dot(xnq.astype(bf16), wq[...], preferred_element_type=f32) + bq[0]   # (Tq, D)
    k = jnp.dot(xna.astype(bf16), wk[...], preferred_element_type=f32) + bk[0]   # (S, D)
    v = jnp.dot(xna.astype(bf16), wv[...], preferred_element_type=f32) + bv[0]   # (S, D)

    # ---- batched-head attention (no per-head loop / slices / concat) ----
    def split_heads(t, n):   # (n, D) -> (H, n, hd)
        return jnp.transpose(t.reshape(n, num_heads, hd), (1, 0, 2))

    qh = (split_heads(q, Tq) * scale).astype(bf16)    # fold 1/sqrt(hd) into q
    kh = split_heads(k, S).astype(bf16)
    vh = split_heads(v, S).astype(bf16)

    s = jnp.einsum('hqd,hkd->hqk', qh, kh, preferred_element_type=f32)   # (H, Tq, S)
    s = s - jnp.max(s, axis=-1, keepdims=True)
    p = jnp.exp(s)
    denom = jnp.sum(p, axis=-1, keepdims=True)
    p = p * pl.reciprocal(denom, approx=True)

    o_heads = jnp.einsum('hqk,hkd->hqd', p.astype(bf16), vh,
                         preferred_element_type=f32)                      # (H, Tq, hd)
    y = jnp.transpose(o_heads, (1, 0, 2)).reshape(Tq, D)                  # concat heads

    attn_out = jnp.dot(y.astype(bf16), wp[...], preferred_element_type=f32) + bp[0]
    x1 = x_q + attn_out                       # residual 1 (f32)

    # ---- LN2 + MLP -------------------------------------------------------
    xn2 = _layernorm(x1, ln2g[0], ln2b[0])
    h = jnp.dot(xn2.astype(bf16), w1[...], preferred_element_type=f32) + b1[0]
    h = _gelu_tanh(h)
    mlp_out = jnp.dot(h.astype(bf16), w2[...], preferred_element_type=f32) + b2[0]

    o_ref[0] = (x1 + mlp_out).astype(o_ref.dtype)     # residual 2


# indices of the big matmul weights inside the params tuple (cast to bf16)
_WEIGHT_IDX = (2, 4, 6, 8, 12, 14)


def encoder_block(x, params, num_heads, *, seq_tile=256, interpret=False):
    B, S, D = x.shape
    assert D % num_heads == 0

    # bf16 weights for the MXU fast path; LN params / biases stay f32.
    params = tuple(
        p.astype(jnp.bfloat16) if i in _WEIGHT_IDX else p.astype(jnp.float32)
        for i, p in enumerate(params))

    # sequence tiling (q-tile axis); fall back to full S for small / non-divisible S.
    tile_s = seq_tile if (seq_tile <= S and S % seq_tile == 0 and seq_tile % 8 == 0) else S
    grid = (B, S // tile_s)

    # weights/biases: whole-array VMEM residents (single-buffered, loaded once).
    resident = pl.BlockSpec(memory_space=pltpu.MemorySpace.VMEM)
    in_specs = [
        pl.BlockSpec((1, tile_s, D), lambda b, qi: (b, qi, 0)),   # x  (query/residual tile)
        pl.BlockSpec((1, S, D), lambda b, qi: (b, 0, 0)),         # x  (full sequence for K/V)
    ] + [resident] * len(params)
    out_spec = pl.BlockSpec((1, tile_s, D), lambda b, qi: (b, qi, 0))

    # scoped VMEM budget: residents + double-buffered activation blocks + intermediates.
    param_bytes = sum(int(p.size) * p.dtype.itemsize for p in params)
    act_bytes = 4 * D * (4 * tile_s + 2 * S)                     # pipelined x/out blocks (x2 bufs)
    inter_bytes = 4 * (3 * S * D + 6 * tile_s * D
                       + num_heads * tile_s * S + 2 * tile_s * 4 * D)
    vmem_limit = int(min(max(int(1.4 * (param_bytes + act_bytes + inter_bytes)) + (2 << 20),
                             32 << 20),
                         56 << 20))

    return pl.pallas_call(
        functools.partial(encoder_block_kernel, num_heads),
        out_shape=jax.ShapeDtypeStruct((B, S, D), x.dtype),
        grid=grid,
        in_specs=in_specs,
        out_specs=out_spec,
        compiler_params=pltpu.CompilerParams(
            dimension_semantics=("parallel", "parallel"),
            vmem_limit_bytes=vmem_limit),
        interpret=interpret,
    )(x, x, *params)


def _reference(x, params, num_heads):
    """Pure-JAX (f32) reference mirroring the PyTorch forward (eval mode)."""
    (ln1g, ln1b, wq, bq, wk, bk, wv, bv, wp, bp,
     ln2g, ln2b, w1, b1, w2, b2) = params
    D = x.shape[-1]
    hd = D // num_heads

    def ln(z, g, b):
        mu = jnp.mean(z, -1, keepdims=True)
        var = jnp.mean((z - mu) ** 2, -1, keepdims=True)
        return (z - mu) / jnp.sqrt(var + 1e-5) * g[0] + b[0]

    xn = ln(x, ln1g, ln1b)
    q = xn @ wq + bq[0]
    k = xn @ wk + bk[0]
    v = xn @ wv + bv[0]
    outs = []
    for h in range(num_heads):
        sl = slice(h * hd, (h + 1) * hd)
        s = jnp.einsum("bqd,bkd->bqk", q[..., sl], k[..., sl]) / math.sqrt(hd)
        p = jax.nn.softmax(s, axis=-1)
        outs.append(jnp.einsum("bqk,bkd->bqd", p, v[..., sl]))
    y = jnp.concatenate(outs, axis=-1)
    x1 = x + (y @ wp + bp[0])
    xn2 = ln(x1, ln2g, ln2b)
    h1 = _gelu_tanh(xn2 @ w1 + b1[0])
    return x1 + (h1 @ w2 + b2[0])


if __name__ == "__main__":
    B, S, D, H = 2, 8, 32, 4          # batch, seq, model_dim, no_heads
    H4 = 4 * D

    key = jax.random.PRNGKey(0)
    keys = jax.random.split(key, 8)

    x = jax.random.normal(keys[0], (B, S, D), dtype=jnp.float32)

    def lin(k, fan_in, fan_out):
        bound = 1.0 / math.sqrt(fan_in)
        kw, kb = jax.random.split(k)
        w = jax.random.uniform(kw, (fan_in, fan_out), jnp.float32, -bound, bound)
        b = jax.random.uniform(kb, (1, fan_out), jnp.float32, -bound, bound)
        return w, b

    ln1g = jnp.ones((1, D), jnp.float32); ln1b = jnp.zeros((1, D), jnp.float32)
    ln2g = jnp.ones((1, D), jnp.float32); ln2b = jnp.zeros((1, D), jnp.float32)
    wq, bq = lin(keys[1], D, D)       # per-head q projections stacked along out axis
    wk, bk = lin(keys[2], D, D)
    wv, bv = lin(keys[3], D, D)
    wp, bp = lin(keys[4], D, D)       # attention output projection
    w1, b1 = lin(keys[5], D, H4)      # MLP up
    w2, b2 = lin(keys[6], H4, D)      # MLP down

    params = (ln1g, ln1b, wq, bq, wk, bk, wv, bv, wp, bp,
              ln2g, ln2b, w1, b1, w2, b2)

    out = encoder_block(x, params, H)
    jax.block_until_ready(out)

    ref = _reference(x, params, H)
    max_err = float(jnp.max(jnp.abs(out - ref)))
    # bf16 MXU matmuls with f32 accumulation -> loosened tolerance vs f32 reference.
    assert jnp.allclose(out, ref, atol=5e-2, rtol=5e-2), f"mismatch vs reference (max abs err {max_err})"

    print("KERNEL_OK")
</pallas_src>

<mosaic_0001>
module attributes {stable_mosaic.version = 11 : i64} {
  func.func @encoder_block_kernel(%arg0: i32, %arg1: i32, %arg2: memref<1x8x32xf32, #tpu.memory_space<vmem>>, %arg3: memref<1x8x32xf32, #tpu.memory_space<vmem>>, %arg4: memref<1x32xf32, #tpu.memory_space<vmem>>, %arg5: memref<1x32xf32, #tpu.memory_space<vmem>>, %arg6: memref<32x32xbf16, #tpu.memory_space<vmem>>, %arg7: memref<1x32xf32, #tpu.memory_space<vmem>>, %arg8: memref<32x32xbf16, #tpu.memory_space<vmem>>, %arg9: memref<1x32xf32, #tpu.memory_space<vmem>>, %arg10: memref<32x32xbf16, #tpu.memory_space<vmem>>, %arg11: memref<1x32xf32, #tpu.memory_space<vmem>>, %arg12: memref<32x32xbf16, #tpu.memory_space<vmem>>, %arg13: memref<1x32xf32, #tpu.memory_space<vmem>>, %arg14: memref<1x32xf32, #tpu.memory_space<vmem>>, %arg15: memref<1x32xf32, #tpu.memory_space<vmem>>, %arg16: memref<32x128xbf16, #tpu.memory_space<vmem>>, %arg17: memref<1x128xf32, #tpu.memory_space<vmem>>, %arg18: memref<128x32xbf16, #tpu.memory_space<vmem>>, %arg19: memref<1x32xf32, #tpu.memory_space<vmem>>, %arg20: memref<1x8x32xf32, #tpu.memory_space<vmem>>) attributes {dimension_semantics = [#tpu.dimension_semantics<parallel>, #tpu.dimension_semantics<parallel>], iteration_bounds = array<i64: 2, 1>, scalar_prefetch = 0 : i64, scratch_operands = 0 : i64, tpu.core_type = #tpu.core_type<tc>, window_params = [{transform_indices = @transform_0, window_bounds = array<i64: 1, 8, 32>}, {transform_indices = @transform_1, window_bounds = array<i64: 1, 8, 32>}, {pipeline_mode = #tpu.pipeline_mode<synchronous>, transform_indices = @transform_2, window_bounds = array<i64: 1, 32>}, {pipeline_mode = #tpu.pipeline_mode<synchronous>, transform_indices = @transform_3, window_bounds = array<i64: 1, 32>}, {pipeline_mode = #tpu.pipeline_mode<synchronous>, transform_indices = @transform_4, window_bounds = array<i64: 32, 32>}, {pipeline_mode = #tpu.pipeline_mode<synchronous>, transform_indices = @transform_5, window_bounds = array<i64: 1, 32>}, {pipeline_mode = #tpu.pipeline_mode<synchronous>, transform_indices = @transform_6, window_bounds = array<i64: 32, 32>}, {pipeline_mode = #tpu.pipeline_mode<synchronous>, transform_indices = @transform_7, window_bounds = array<i64: 1, 32>}, {pipeline_mode = #tpu.pipeline_mode<synchronous>, transform_indices = @transform_8, window_bounds = array<i64: 32, 32>}, {pipeline_mode = #tpu.pipeline_mode<synchronous>, transform_indices = @transform_9, window_bounds = array<i64: 1, 32>}, {pipeline_mode = #tpu.pipeline_mode<synchronous>, transform_indices = @transform_10, window_bounds = array<i64: 32, 32>}, {pipeline_mode = #tpu.pipeline_mode<synchronous>, transform_indices = @transform_11, window_bounds = array<i64: 1, 32>}, {pipeline_mode = #tpu.pipeline_mode<synchronous>, transform_indices = @transform_12, window_bounds = array<i64: 1, 32>}, {pipeline_mode = #tpu.pipeline_mode<synchronous>, transform_indices = @transform_13, window_bounds = array<i64: 1, 32>}, {pipeline_mode = #tpu.pipeline_mode<synchronous>, transform_indices = @transform_14, window_bounds = array<i64: 32, 128>}, {pipeline_mode = #tpu.pipeline_mode<synchronous>, transform_indices = @transform_15, window_bounds = array<i64: 1, 128>}, {pipeline_mode = #tpu.pipeline_mode<synchronous>, transform_indices = @transform_16, window_bounds = array<i64: 128, 32>}, {pipeline_mode = #tpu.pipeline_mode<synchronous>, transform_indices = @transform_17, window_bounds = array<i64: 1, 32>}, {transform_indices = @transform_18, window_bounds = array<i64: 1, 8, 32>}]} {
    %c0 = arith.constant 0 : index
    %c0_0 = arith.constant 0 : index
    %c0_1 = arith.constant 0 : index
    %0 = vector.load %arg2[%c0, %c0_0, %c0_1] : memref<1x8x32xf32, #tpu.memory_space<vmem>>, vector<1x8x32xf32>
    %1 = vector.shape_cast %0 : vector<1x8x32xf32> to vector<8x32xf32>
    %c0_2 = arith.constant 0 : index
    %c0_3 = arith.constant 0 : index
    %c0_4 = arith.constant 0 : index
    %2 = vector.load %arg3[%c0_2, %c0_3, %c0_4] : memref<1x8x32xf32, #tpu.memory_space<vmem>>, vector<1x8x32xf32>
    %3 = vector.shape_cast %2 : vector<1x8x32xf32> to vector<8x32xf32>
    %c0_5 = arith.constant 0 : index
    %c0_6 = arith.constant 0 : index
    %4 = vector.load %arg4[%c0_5, %c0_6] : memref<1x32xf32, #tpu.memory_space<vmem>>, vector<1x32xf32>
    %5 = vector.shape_cast %4 : vector<1x32xf32> to vector<32xf32>
    %c0_7 = arith.constant 0 : index
    %c0_8 = arith.constant 0 : index
    %6 = vector.load %arg5[%c0_7, %c0_8] : memref<1x32xf32, #tpu.memory_space<vmem>>, vector<1x32xf32>
    %7 = vector.shape_cast %6 : vector<1x32xf32> to vector<32xf32>
    %cst = arith.constant dense<0.000000e+00> : vector<8xf32>
    %8 = vector.multi_reduction <add>, %1, %cst [1] : vector<8x32xf32> to vector<8xf32>
    %9 = vector.shape_cast %8 : vector<8xf32> to vector<8x1xf32>
    %cst_9 = arith.constant 3.200000e+01 : f32
    %10 = vector.broadcast %cst_9 : f32 to vector<8x1xf32>
    %11 = arith.divf %9, %10 : vector<8x1xf32>
    %12 = vector.broadcast %11 : vector<8x1xf32> to vector<8x32xf32>
    %13 = arith.subf %1, %12 : vector<8x32xf32>
    %14 = arith.mulf %13, %13 : vector<8x32xf32>
    %cst_10 = arith.constant dense<0.000000e+00> : vector<8xf32>
    %15 = vector.multi_reduction <add>, %14, %cst_10 [1] : vector<8x32xf32> to vector<8xf32>
    %16 = vector.shape_cast %15 : vector<8xf32> to vector<8x1xf32>
    %cst_11 = arith.constant 3.200000e+01 : f32
    %17 = vector.broadcast %cst_11 : f32 to vector<8x1xf32>
    %18 = arith.divf %16, %17 : vector<8x1xf32>
    %19 = vector.broadcast %11 : vector<8x1xf32> to vector<8x32xf32>
    %20 = arith.subf %1, %19 : vector<8x32xf32>
    %cst_12 = arith.constant 9.99999974E-6 : f32
    %21 = vector.broadcast %cst_12 : f32 to vector<8x1xf32>
    %22 = arith.addf %18, %21 : vector<8x1xf32>
    %23 = math.rsqrt %22 : vector<8x1xf32>
    %24 = vector.broadcast %23 : vector<8x1xf32> to vector<8x32xf32>
    %25 = arith.mulf %20, %24 : vector<8x32xf32>
    %26 = vector.shape_cast %5 : vector<32xf32> to vector<1x32xf32>
    %27 = vector.broadcast %26 : vector<1x32xf32> to vector<8x32xf32>
    %28 = arith.mulf %25, %27 : vector<8x32xf32>
    %29 = vector.shape_cast %7 : vector<32xf32> to vector<1x32xf32>
    %30 = vector.broadcast %29 : vector<1x32xf32> to vector<8x32xf32>
    %31 = arith.addf %28, %30 : vector<8x32xf32>
    %cst_13 = arith.constant dense<0.000000e+00> : vector<8xf32>
    %32 = vector.multi_reduction <add>, %3, %cst_13 [1] : vector<8x32xf32> to vector<8xf32>
    %33 = vector.shape_cast %32 : vector<8xf32> to vector<8x1xf32>
    %cst_14 = arith.constant 3.200000e+01 : f32
    %34 = vector.broadcast %cst_14 : f32 to vector<8x1xf32>
    %35 = arith.divf %33, %34 : vector<8x1xf32>
    %36 = vector.broadcast %35 : vector<8x1xf32> to vector<8x32xf32>
    %37 = arith.subf %3, %36 : vector<8x32xf32>
    %38 = arith.mulf %37, %37 : vector<8x32xf32>
    %cst_15 = arith.constant dense<0.000000e+00> : vector<8xf32>
    %39 = vector.multi_reduction <add>, %38, %cst_15 [1] : vector<8x32xf32> to vector<8xf32>
    %40 = vector.shape_cast %39 : vector<8xf32> to vector<8x1xf32>
    %cst_16 = arith.constant 3.200000e+01 : f32
    %41 = vector.broadcast %cst_16 : f32 to vector<8x1xf32>
    %42 = arith.divf %40, %41 : vector<8x1xf32>
    %43 = vector.broadcast %35 : vector<8x1xf32> to vector<8x32xf32>
    %44 = arith.subf %3, %43 : vector<8x32xf32>
    %cst_17 = arith.constant 9.99999974E-6 : f32
    %45 = vector.broadcast %cst_17 : f32 to vector<8x1xf32>
    %46 = arith.addf %42, %45 : vector<8x1xf32>
    %47 = math.rsqrt %46 : vector<8x1xf32>
    %48 = vector.broadcast %47 : vector<8x1xf32> to vector<8x32xf32>
    %49 = arith.mulf %44, %48 : vector<8x32xf32>
    %50 = vector.shape_cast %5 : vector<32xf32> to vector<1x32xf32>
    %51 = vector.broadcast %50 : vector<1x32xf32> to vector<8x32xf32>
    %52 = arith.mulf %49, %51 : vector<8x32xf32>
    %53 = vector.shape_cast %7 : vector<32xf32> to vector<1x32xf32>
    %54 = vector.broadcast %53 : vector<1x32xf32> to vector<8x32xf32>
    %55 = arith.addf %52, %54 : vector<8x32xf32>
    %56 = arith.truncf %31 : vector<8x32xf32> to vector<8x32xbf16>
    %c0_18 = arith.constant 0 : index
    %c0_19 = arith.constant 0 : index
    %57 = vector.load %arg6[%c0_18, %c0_19] : memref<32x32xbf16, #tpu.memory_space<vmem>>, vector<32x32xbf16>
    %cst_20 = arith.constant dense<0.000000e+00> : vector<8x32xf32>
    %58 = tpu.matmul %56, %57, %cst_20 {dimension_numbers = #tpu.dot_dimension_numbers<[1], [0], [0], [1], [0, 0, 1, 1], [], []>} : vector<8x32xbf16>, vector<32x32xbf16>, vector<8x32xf32> -> vector<8x32xf32>
    %c0_21 = arith.constant 0 : index
    %c0_22 = arith.constant 0 : index
    %59 = vector.load %arg7[%c0_21, %c0_22] : memref<1x32xf32, #tpu.memory_space<vmem>>, vector<1x32xf32>
    %60 = vector.shape_cast %59 : vector<1x32xf32> to vector<32xf32>
    %61 = vector.shape_cast %60 : vector<32xf32> to vector<1x32xf32>
    %62 = vector.broadcast %61 : vector<1x32xf32> to vector<8x32xf32>
    %63 = arith.addf %58, %62 : vector<8x32xf32>
    %64 = arith.truncf %55 : vector<8x32xf32> to vector<8x32xbf16>
    %c0_23 = arith.constant 0 : index
    %c0_24 = arith.constant 0 : index
    %65 = vector.load %arg8[%c0_23, %c0_24] : memref<32x32xbf16, #tpu.memory_space<vmem>>, vector<32x32xbf16>
    %cst_25 = arith.constant dense<0.000000e+00> : vector<8x32xf32>
    %66 = tpu.matmul %64, %65, %cst_25 {dimension_numbers = #tpu.dot_dimension_numbers<[1], [0], [0], [1], [0, 0, 1, 1], [], []>} : vector<8x32xbf16>, vector<32x32xbf16>, vector<8x32xf32> -> vector<8x32xf32>
    %c0_26 = arith.constant 0 : index
    %c0_27 = arith.constant 0 : index
    %67 = vector.load %arg9[%c0_26, %c0_27] : memref<1x32xf32, #tpu.memory_space<vmem>>, vector<1x32xf32>
    %68 = vector.shape_cast %67 : vector<1x32xf32> to vector<32xf32>
    %69 = vector.shape_cast %68 : vector<32xf32> to vector<1x32xf32>
    %70 = vector.broadcast %69 : vector<1x32xf32> to vector<8x32xf32>
    %71 = arith.addf %66, %70 : vector<8x32xf32>
    %72 = arith.truncf %55 : vector<8x32xf32> to vector<8x32xbf16>
    %c0_28 = arith.constant 0 : index
    %c0_29 = arith.constant 0 : index
    %73 = vector.load %arg10[%c0_28, %c0_29] : memref<32x32xbf16, #tpu.memory_space<vmem>>, vector<32x32xbf16>
    %cst_30 = arith.constant dense<0.000000e+00> : vector<8x32xf32>
    %74 = tpu.matmul %72, %73, %cst_30 {dimension_numbers = #tpu.dot_dimension_numbers<[1], [0], [0], [1], [0, 0, 1, 1], [], []>} : vector<8x32xbf16>, vector<32x32xbf16>, vector<8x32xf32> -> vector<8x32xf32>
    %c0_31 = arith.constant 0 : index
    %c0_32 = arith.constant 0 : index
    %75 = vector.load %arg11[%c0_31, %c0_32] : memref<1x32xf32, #tpu.memory_space<vmem>>, vector<1x32xf32>
    %76 = vector.shape_cast %75 : vector<1x32xf32> to vector<32xf32>
    %77 = vector.shape_cast %76 : vector<32xf32> to vector<1x32xf32>
    %78 = vector.broadcast %77 : vector<1x32xf32> to vector<8x32xf32>
    %79 = arith.addf %74, %78 : vector<8x32xf32>
    %80 = vector.shape_cast %63 : vector<8x32xf32> to vector<8x4x8xf32>
    %81 = tpu.transpose %80, [1, 0, 2] : vector<8x4x8xf32> -> vector<4x8x8xf32>
    %cst_33 = arith.constant 0.353553385 : f32
    %82 = vector.broadcast %cst_33 : f32 to vector<4x8x8xf32>
    %83 = arith.mulf %81, %82 : vector<4x8x8xf32>
    %84 = arith.truncf %83 : vector<4x8x8xf32> to vector<4x8x8xbf16>
    %85 = vector.shape_cast %71 : vector<8x32xf32> to vector<8x4x8xf32>
    %86 = tpu.transpose %85, [1, 0, 2] : vector<8x4x8xf32> -> vector<4x8x8xf32>
    %87 = arith.truncf %86 : vector<4x8x8xf32> to vector<4x8x8xbf16>
    %88 = vector.shape_cast %79 : vector<8x32xf32> to vector<8x4x8xf32>
    %89 = tpu.transpose %88, [1, 0, 2] : vector<8x4x8xf32> -> vector<4x8x8xf32>
    %90 = arith.truncf %89 : vector<4x8x8xf32> to vector<4x8x8xbf16>
    "tpu.trace_start"() <{level = 10 : i32, message = "hqd,hkd->hqk"}> : () -> ()
    %cst_34 = arith.constant dense<0.000000e+00> : vector<4x8x8xf32>
    %91 = tpu.matmul %84, %87, %cst_34 {dimension_numbers = #tpu.dot_dimension_numbers<[2], [2], [1], [1], [0, 0, 0, 1, 1, 1], [0], [0]>} : vector<4x8x8xbf16>, vector<4x8x8xbf16>, vector<4x8x8xf32> -> vector<4x8x8xf32>
    "tpu.trace_stop"() : () -> ()
    %cst_35 = arith.constant dense<0xFF800000> : vector<4x8xf32>
    %92 = vector.multi_reduction <maximumf>, %91, %cst_35 [2] : vector<4x8x8xf32> to vector<4x8xf32>
    %93 = vector.shape_cast %92 : vector<4x8xf32> to vector<4x8x1xf32>
    %94 = vector.broadcast %93 : vector<4x8x1xf32> to vector<4x8x8xf32>
    %95 = arith.subf %91, %94 : vector<4x8x8xf32>
    %96 = math.exp %95 : vector<4x8x8xf32>
    %cst_36 = arith.constant dense<0.000000e+00> : vector<4x8xf32>
    %97 = vector.multi_reduction <add>, %96, %cst_36 [2] : vector<4x8x8xf32> to vector<4x8xf32>
    %98 = vector.shape_cast %97 : vector<4x8xf32> to vector<4x8x1xf32>
    %99 = tpu.reciprocal %98 {approx = true} : vector<4x8x1xf32> -> vector<4x8x1xf32>
    %100 = vector.broadcast %99 : vector<4x8x1xf32> to vector<4x8x8xf32>
    %101 = arith.mulf %96, %100 : vector<4x8x8xf32>
    %102 = arith.truncf %101 : vector<4x8x8xf32> to vector<4x8x8xbf16>
    "tpu.trace_start"() <{level = 10 : i32, message = "hqk,hkd->hqd"}> : () -> ()
    %cst_37 = arith.constant dense<0.000000e+00> : vector<4x8x8xf32>
    %103 = tpu.matmul %102, %90, %cst_37 {dimension_numbers = #tpu.dot_dimension_numbers<[2], [1], [1], [2], [0, 0, 0, 1, 1, 2], [0], [0]>} : vector<4x8x8xbf16>, vector<4x8x8xbf16>, vector<4x8x8xf32> -> vector<4x8x8xf32>
    "tpu.trace_stop"() : () -> ()
    %104 = tpu.transpose %103, [1, 0, 2] : vector<4x8x8xf32> -> vector<8x4x8xf32>
    %105 = vector.shape_cast %104 : vector<8x4x8xf32> to vector<8x32xf32>
    %106 = arith.truncf %105 : vector<8x32xf32> to vector<8x32xbf16>
    %c0_38 = arith.constant 0 : index
    %c0_39 = arith.constant 0 : index
    %107 = vector.load %arg12[%c0_38, %c0_39] : memref<32x32xbf16, #tpu.memory_space<vmem>>, vector<32x32xbf16>
    %cst_40 = arith.constant dense<0.000000e+00> : vector<8x32xf32>
    %108 = tpu.matmul %106, %107, %cst_40 {dimension_numbers = #tpu.dot_dimension_numbers<[1], [0], [0], [1], [0, 0, 1, 1], [], []>} : vector<8x32xbf16>, vector<32x32xbf16>, vector<8x32xf32> -> vector<8x32xf32>
    %c0_41 = arith.constant 0 : index
    %c0_42 = arith.constant 0 : index
    %109 = vector.load %arg13[%c0_41, %c0_42] : memref<1x32xf32, #tpu.memory_space<vmem>>, vector<1x32xf32>
    %110 = vector.shape_cast %109 : vector<1x32xf32> to vector<32xf32>
    %111 = vector.shape_cast %110 : vector<32xf32> to vector<1x32xf32>
    %112 = vector.broadcast %111 : vector<1x32xf32> to vector<8x32xf32>
    %113 = arith.addf %108, %112 : vector<8x32xf32>
    %114 = arith.addf %1, %113 : vector<8x32xf32>
    %c0_43 = arith.constant 0 : index
    %c0_44 = arith.constant 0 : index
    %115 = vector.load %arg14[%c0_43, %c0_44] : memref<1x32xf32, #tpu.memory_space<vmem>>, vector<1x32xf32>
    %116 = vector.shape_cast %115 : vector<1x32xf32> to vector<32xf32>
    %c0_45 = arith.constant 0 : index
    %c0_46 = arith.constant 0 : index
    %117 = vector.load %arg15[%c0_45, %c0_46] : memref<1x32xf32, #tpu.memory_space<vmem>>, vector<1x32xf32>
    %118 = vector.shape_cast %117 : vector<1x32xf32> to vector<32xf32>
    %cst_47 = arith.constant dense<0.000000e+00> : vector<8xf32>
    %119 = vector.multi_reduction <add>, %114, %cst_47 [1] : vector<8x32xf32> to vector<8xf32>
    %120 = vector.shape_cast %119 : vector<8xf32> to vector<8x1xf32>
    %cst_48 = arith.constant 3.200000e+01 : f32
    %121 = vector.broadcast %cst_48 : f32 to vector<8x1xf32>
    %122 = arith.divf %120, %121 : vector<8x1xf32>
    %123 = vector.broadcast %122 : vector<8x1xf32> to vector<8x32xf32>
    %124 = arith.subf %114, %123 : vector<8x32xf32>
    %125 = arith.mulf %124, %124 : vector<8x32xf32>
    %cst_49 = arith.constant dense<0.000000e+00> : vector<8xf32>
    %126 = vector.multi_reduction <add>, %125, %cst_49 [1] : vector<8x32xf32> to vector<8xf32>
    %127 = vector.shape_cast %126 : vector<8xf32> to vector<8x1xf32>
    %cst_50 = arith.constant 3.200000e+01 : f32
    %128 = vector.broadcast %cst_50 : f32 to vector<8x1xf32>
    %129 = arith.divf %127, %128 : vector<8x1xf32>
    %130 = vector.broadcast %122 : vector<8x1xf32> to vector<8x32xf32>
    %131 = arith.subf %114, %130 : vector<8x32xf32>
    %cst_51 = arith.constant 9.99999974E-6 : f32
    %132 = vector.broadcast %cst_51 : f32 to vector<8x1xf32>
    %133 = arith.addf %129, %132 : vector<8x1xf32>
    %134 = math.rsqrt %133 : vector<8x1xf32>
    %135 = vector.broadcast %134 : vector<8x1xf32> to vector<8x32xf32>
    %136 = arith.mulf %131, %135 : vector<8x32xf32>
    %137 = vector.shape_cast %116 : vector<32xf32> to vector<1x32xf32>
    %138 = vector.broadcast %137 : vector<1x32xf32> to vector<8x32xf32>
    %139 = arith.mulf %136, %138 : vector<8x32xf32>
    %140 = vector.shape_cast %118 : vector<32xf32> to vector<1x32xf32>
    %141 = vector.broadcast %140 : vector<1x32xf32> to vector<8x32xf32>
    %142 = arith.addf %139, %141 : vector<8x32xf32>
    %143 = arith.truncf %142 : vector<8x32xf32> to vector<8x32xbf16>
    %c0_52 = arith.constant 0 : index
    %c0_53 = arith.constant 0 : index
    %144 = vector.load %arg16[%c0_52, %c0_53] : memref<32x128xbf16, #tpu.memory_space<vmem>>, vector<32x128xbf16>
    %cst_54 = arith.constant dense<0.000000e+00> : vector<8x128xf32>
    %145 = tpu.matmul %143, %144, %cst_54 {dimension_numbers = #tpu.dot_dimension_numbers<[1], [0], [0], [1], [0, 0, 1, 1], [], []>} : vector<8x32xbf16>, vector<32x128xbf16>, vector<8x128xf32> -> vector<8x128xf32>
    %c0_55 = arith.constant 0 : index
    %c0_56 = arith.constant 0 : index
    %146 = vector.load %arg17[%c0_55, %c0_56] : memref<1x128xf32, #tpu.memory_space<vmem>>, vector<1x128xf32>
    %147 = vector.shape_cast %146 : vector<1x128xf32> to vector<128xf32>
    %148 = vector.shape_cast %147 : vector<128xf32> to vector<1x128xf32>
    %149 = vector.broadcast %148 : vector<1x128xf32> to vector<8x128xf32>
    %150 = arith.addf %145, %149 : vector<8x128xf32>
    %cst_57 = arith.constant 5.000000e-01 : f32
    %151 = vector.broadcast %cst_57 : f32 to vector<8x128xf32>
    %152 = arith.mulf %151, %150 : vector<8x128xf32>
    %cst_58 = arith.constant 4.471500e-02 : f32
    %153 = vector.broadcast %cst_58 : f32 to vector<8x128xf32>
    %154 = arith.mulf %153, %150 : vector<8x128xf32>
    %155 = arith.mulf %154, %150 : vector<8x128xf32>
    %156 = arith.mulf %155, %150 : vector<8x128xf32>
    %157 = arith.addf %150, %156 : vector<8x128xf32>
    %cst_59 = arith.constant 0.797884583 : f32
    %158 = vector.broadcast %cst_59 : f32 to vector<8x128xf32>
    %159 = arith.mulf %158, %157 : vector<8x128xf32>
    %160 = math.tanh %159 : vector<8x128xf32>
    %cst_60 = arith.constant 1.000000e+00 : f32
    %161 = vector.broadcast %cst_60 : f32 to vector<8x128xf32>
    %162 = arith.addf %161, %160 : vector<8x128xf32>
    %163 = arith.mulf %152, %162 : vector<8x128xf32>
    %164 = arith.truncf %163 : vector<8x128xf32> to vector<8x128xbf16>
    %c0_61 = arith.constant 0 : index
    %c0_62 = arith.constant 0 : index
    %165 = vector.load %arg18[%c0_61, %c0_62] : memref<128x32xbf16, #tpu.memory_space<vmem>>, vector<128x32xbf16>
    %cst_63 = arith.constant dense<0.000000e+00> : vector<8x32xf32>
    %166 = tpu.matmul %164, %165, %cst_63 {dimension_numbers = #tpu.dot_dimension_numbers<[1], [0], [0], [1], [0, 0, 1, 1], [], []>} : vector<8x128xbf16>, vector<128x32xbf16>, vector<8x32xf32> -> vector<8x32xf32>
    %c0_64 = arith.constant 0 : index
    %c0_65 = arith.constant 0 : index
    %167 = vector.load %arg19[%c0_64, %c0_65] : memref<1x32xf32, #tpu.memory_space<vmem>>, vector<1x32xf32>
    %168 = vector.shape_cast %167 : vector<1x32xf32> to vector<32xf32>
    %169 = vector.shape_cast %168 : vector<32xf32> to vector<1x32xf32>
    %170 = vector.broadcast %169 : vector<1x32xf32> to vector<8x32xf32>
    %171 = arith.addf %166, %170 : vector<8x32xf32>
    %172 = arith.addf %114, %171 : vector<8x32xf32>
    %c0_66 = arith.constant 0 : index
    %c0_67 = arith.constant 0 : index
    %c0_68 = arith.constant 0 : index
    %173 = vector.load %arg20[%c0_66, %c0_67, %c0_68] : memref<1x8x32xf32, #tpu.memory_space<vmem>>, vector<1x8x32xf32>
    %174 = vector.shape_cast %173 : vector<1x8x32xf32> to vector<8x32xf32>
    %175 = vector.shape_cast %172 : vector<8x32xf32> to vector<1x8x32xf32>
    tpu.vector_store %arg20[%c0_66, %c0_67, %c0_68], %175 {strides = array<i32>} : memref<1x8x32xf32, #tpu.memory_space<vmem>>, vector<1x8x32xf32>,
    return
  }
  func.func @transform_0(%arg0: i32, %arg1: i32) -> (i32, i32, i32) {
    %c0_i32 = arith.constant 0 : i32
    %c0_i32_0 = arith.constant 0 : i32
    return %arg0, %arg1, %c0_i32 : i32, i32, i32
  }
  func.func @transform_1(%arg0: i32, %arg1: i32) -> (i32, i32, i32) {
    %c0_i32 = arith.constant 0 : i32
    %c0_i32_0 = arith.constant 0 : i32
    %c0_i32_1 = arith.constant 0 : i32
    return %arg0, %c0_i32, %c0_i32_0 : i32, i32, i32
  }
  func.func @transform_2(%arg0: i32, %arg1: i32) -> (i32, i32) {
    %c0_i32 = arith.constant 0 : i32
    %c0_i32_0 = arith.constant 0 : i32
    %c0_i32_1 = arith.constant 0 : i32
    return %c0_i32, %c0_i32_0 : i32, i32
  }
  func.func @transform_3(%arg0: i32, %arg1: i32) -> (i32, i32) {
    %c0_i32 = arith.constant 0 : i32
    %c0_i32_0 = arith.constant 0 : i32
    %c0_i32_1 = arith.constant 0 : i32
    return %c0_i32, %c0_i32_0 : i32, i32
  }
  func.func @transform_4(%arg0: i32, %arg1: i32) -> (i32, i32) {
    %c0_i32 = arith.constant 0 : i32
    %c0_i32_0 = arith.constant 0 : i32
    %c0_i32_1 = arith.constant 0 : i32
    return %c0_i32, %c0_i32_0 : i32, i32
  }
  func.func @transform_5(%arg0: i32, %arg1: i32) -> (i32, i32) {
    %c0_i32 = arith.constant 0 : i32
    %c0_i32_0 = arith.constant 0 : i32
    %c0_i32_1 = arith.constant 0 : i32
    return %c0_i32, %c0_i32_0 : i32, i32
  }
  func.func @transform_6(%arg0: i32, %arg1: i32) -> (i32, i32) {
    %c0_i32 = arith.constant 0 : i32
    %c0_i32_0 = arith.constant 0 : i32
    %c0_i32_1 = arith.constant 0 : i32
    return %c0_i32, %c0_i32_0 : i32, i32
  }
  func.func @transform_7(%arg0: i32, %arg1: i32) -> (i32, i32) {
    %c0_i32 = arith.constant 0 : i32
    %c0_i32_0 = arith.constant 0 : i32
    %c0_i32_1 = arith.constant 0 : i32
    return %c0_i32, %c0_i32_0 : i32, i32
  }
  func.func @transform_8(%arg0: i32, %arg1: i32) -> (i32, i32) {
    %c0_i32 = arith.constant 0 : i32
    %c0_i32_0 = arith.constant 0 : i32
    %c0_i32_1 = arith.constant 0 : i32
    return %c0_i32, %c0_i32_0 : i32, i32
  }
  func.func @transform_9(%arg0: i32, %arg1: i32) -> (i32, i32) {
    %c0_i32 = arith.constant 0 : i32
    %c0_i32_0 = arith.constant 0 : i32
    %c0_i32_1 = arith.constant 0 : i32
    return %c0_i32, %c0_i32_0 : i32, i32
  }
  func.func @transform_10(%arg0: i32, %arg1: i32) -> (i32, i32) {
    %c0_i32 = arith.constant 0 : i32
    %c0_i32_0 = arith.constant 0 : i32
    %c0_i32_1 = arith.constant 0 : i32
    return %c0_i32, %c0_i32_0 : i32, i32
  }
  func.func @transform_11(%arg0: i32, %arg1: i32) -> (i32, i32) {
    %c0_i32 = arith.constant 0 : i32
    %c0_i32_0 = arith.constant 0 : i32
    %c0_i32_1 = arith.constant 0 : i32
    return %c0_i32, %c0_i32_0 : i32, i32
  }
  func.func @transform_12(%arg0: i32, %arg1: i32) -> (i32, i32) {
    %c0_i32 = arith.constant 0 : i32
    %c0_i32_0 = arith.constant 0 : i32
    %c0_i32_1 = arith.constant 0 : i32
    return %c0_i32, %c0_i32_0 : i32, i32
  }
  func.func @transform_13(%arg0: i32, %arg1: i32) -> (i32, i32) {
    %c0_i32 = arith.constant 0 : i32
    %c0_i32_0 = arith.constant 0 : i32
    %c0_i32_1 = arith.constant 0 : i32
    return %c0_i32, %c0_i32_0 : i32, i32
  }
  func.func @transform_14(%arg0: i32, %arg1: i32) -> (i32, i32) {
    %c0_i32 = arith.constant 0 : i32
    %c0_i32_0 = arith.constant 0 : i32
    %c0_i32_1 = arith.constant 0 : i32
    return %c0_i32, %c0_i32_0 : i32, i32
  }
  func.func @transform_15(%arg0: i32, %arg1: i32) -> (i32, i32) {
    %c0_i32 = arith.constant 0 : i32
    %c0_i32_0 = arith.constant 0 : i32
    %c0_i32_1 = arith.constant 0 : i32
    return %c0_i32, %c0_i32_0 : i32, i32
  }
  func.func @transform_16(%arg0: i32, %arg1: i32) -> (i32, i32) {
    %c0_i32 = arith.constant 0 : i32
    %c0_i32_0 = arith.constant 0 : i32
    %c0_i32_1 = arith.constant 0 : i32
    return %c0_i32, %c0_i32_0 : i32, i32
  }
  func.func @transform_17(%arg0: i32, %arg1: i32) -> (i32, i32) {
    %c0_i32 = arith.constant 0 : i32
    %c0_i32_0 = arith.constant 0 : i32
    %c0_i32_1 = arith.constant 0 : i32
    return %c0_i32, %c0_i32_0 : i32, i32
  }
  func.func @transform_18(%arg0: i32, %arg1: i32) -> (i32, i32, i32) {
    %c0_i32 = arith.constant 0 : i32
    %c0_i32_0 = arith.constant 0 : i32
    return %arg0, %arg1, %c0_i32 : i32, i32, i32
  }
}

</mosaic_0001>

<llo_original>
// kernel: tpu_custom_call.1
$region0: #{tpu_custom_call.1}
  #allocation0 [shape = 'u32[]', space=smem, size = 0x4, offset = 0x4, fixed_abs, tag = 'smem constant byte address 0x4 - core index']
  #allocation1 [shape = 'u32[144,128]{1,0:T(1,128)}', space=vmem, size = 0x12000, scoped, tag = 'internal scratch']
  %s0 = inlined_call_operand.vmem [shape: f32[2,8,32], index: 0, kind: input, shape index: {}]
  %s1 = inlined_call_operand.vmem [shape: f32[2,8,32], index: 1, kind: input, shape index: {}]
  %s2 = inlined_call_operand.vmem [shape: f32[1,32], index: 2, kind: input, shape index: {}]
  %s3 = inlined_call_operand.vmem [shape: f32[1,32], index: 3, kind: input, shape index: {}]
  %s4 = inlined_call_operand.vmem [shape: bf16[32,32], index: 4, kind: input, shape index: {}]
  %s5 = inlined_call_operand.vmem [shape: f32[1,32], index: 5, kind: input, shape index: {}]
  %s6 = inlined_call_operand.vmem [shape: bf16[32,32], index: 6, kind: input, shape index: {}]
  %s7 = inlined_call_operand.vmem [shape: f32[1,32], index: 7, kind: input, shape index: {}]
  %s8 = inlined_call_operand.vmem [shape: bf16[32,32], index: 8, kind: input, shape index: {}]
  %s9 = inlined_call_operand.vmem [shape: f32[1,32], index: 9, kind: input, shape index: {}]
  %s10 = inlined_call_operand.hbm [shape: bf16[32,32], index: 10, kind: input, shape index: {}]
  %s11 = inlined_call_operand.vmem [shape: f32[1,32], index: 11, kind: input, shape index: {}]
  %s12 = inlined_call_operand.vmem [shape: f32[1,32], index: 12, kind: input, shape index: {}]
  %s13 = inlined_call_operand.vmem [shape: f32[1,32], index: 13, kind: input, shape index: {}]
  %s14 = inlined_call_operand.hbm [shape: bf16[32,128], index: 14, kind: input, shape index: {}]
  %s15 = inlined_call_operand.vmem [shape: f32[1,128], index: 15, kind: input, shape index: {}]
  %s16 = inlined_call_operand.vmem [shape: bf16[128,32], index: 16, kind: input, shape index: {}]
  %s17 = inlined_call_operand.vmem [shape: f32[1,32], index: 17, kind: input, shape index: {}]
  %s18 = inlined_call_operand.hbm [shape: f32[2,8,32], index: 18, kind: output, shape index: {}]
  %s19 = sld [smem:[#allocation0]]
  $region113: #{tpu_custom_call.1} parent=0
    _
  %s21 = ssub.s32 1, %s19
  %s22 = scalar_select 0, %s21, %s19
  $region1: #{tpu_custom_call.1} parent=0
    #allocation2 [shape = 'u8[8192]{0}', space=vmem, size = 0x2000, scoped, tag = 'input window, operand 10, single buffered']
    #allocation3 [shape = 's32[2]{0}', space=sflag, size = 0x8, scoped, tag = 'scoped memory for tpu_custom_call.1']
    #allocation4 [shape = 's32[2]{0}', space=sflag, size = 0x8, scoped, tag = 'scoped memory for tpu_custom_call.1']
    #allocation5 [shape = 'u8[8192]{0}', space=vmem, size = 0x2000, scoped, tag = 'input window, operand 14, single buffered']
    #allocation6 [shape = 's32[1]{0}', space=sflag, size = 0x4, scoped, tag = 'scoped memory for tpu_custom_call.1']
    #allocation7 [shape = 'u8[8192]{0}', space=vmem, size = 0x2000, scoped, tag = 'output window, operand 0']
    %23 = vsyncpa [#allocation3], 0
    %24 = vsyncpa [#allocation6], 0
    %25 = vsyncpa [#allocation4], 0
    %s26 = scalar_lea.sflag [#allocation4], 1
    %27 = vsyncpa %s26, 0
    loop: start=0, step=1, limit=4
    $region2: #{tpu_custom_call.1} parent=1 // loop_pre_header
      _
    $region3: #{tpu_custom_call.1} parent=1 // loop_header
      %s29 = sphi 0, %s33
      %p30 = scmp.ge.s32.totalorder %s29, 4
      %s36 = sphi 0, %s48
      %s37 = sphi 0, %s44
      %s38 = sphi 0, %s36
      %s39 = sphi 0, %s37
      %s40 = sphi 0, %s38
      %s41 = sphi 0, %s39
      %s53 = sphi 0, %s55
      %s56 = sphi 0, %s53
      %s57 = sphi 0, %s56
      %s73 = sphi 0, %s57
      %s79 = sphi 0, %s81
      %s82 = sphi 0, %s79
      %s83 = sphi 0, %s82
      %s99 = sphi 0, %s83
      %s103 = sphi 0, %s103
      %s105 = sphi 0, %s103
      %s106 = sphi 0, %s105
      %s120 = sphi 0, %s106
      %s124 = sphi 0, %s124
      %s126 = sphi 0, %s124
      %s127 = sphi 0, %s126
      %s141 = sphi 0, %s127
      %s145 = sphi 0, %s145
      %s147 = sphi 0, %s145
      %s148 = sphi 0, %s147
      %s162 = sphi 0, %s148
      %s166 = sphi 0, %s166
      %s168 = sphi 0, %s166
      %s169 = sphi 0, %s168
      %s183 = sphi 0, %s169
      %s187 = sphi 0, %s187
      %s189 = sphi 0, %s187
      %s190 = sphi 0, %s189
      %s204 = sphi 0, %s190
      %s208 = sphi 0, %s208
      %s210 = sphi 0, %s208
      %s211 = sphi 0, %s210
      %s225 = sphi 0, %s211
      %s229 = sphi 0, %s229
      %s231 = sphi 0, %s229
      %s232 = sphi 0, %s231
      %s246 = sphi 0, %s232
      %s250 = sphi 0, %s250
      %s252 = sphi 0, %s250
      %s253 = sphi 0, %s252
      %s267 = sphi 0, %s253
      %s271 = sphi 0, %s271
      %s273 = sphi 0, %s271
      %s274 = sphi 0, %s273
      %s288 = sphi 0, %s274
      %s292 = sphi 0, %s292
      %s294 = sphi 0, %s292
      %s295 = sphi 0, %s294
      %s309 = sphi 0, %s295
      %s313 = sphi 0, %s313
      %s315 = sphi 0, %s313
      %s316 = sphi 0, %s315
      %s330 = sphi 0, %s316
      %s334 = sphi 0, %s334
      %s336 = sphi 0, %s334
      %s337 = sphi 0, %s336
      %s351 = sphi 0, %s337
      %s355 = sphi 0, %s355
      %s357 = sphi 0, %s355
      %s358 = sphi 0, %s357
      %s372 = sphi 0, %s358
      %s376 = sphi 0, %s376
      %s378 = sphi 0, %s376
      %s379 = sphi 0, %s378
      %s393 = sphi 0, %s379
      %s397 = sphi 0, %s397
      %s399 = sphi 0, %s397
      %s400 = sphi 0, %s399
      %s414 = sphi 0, %s400
      %s418 = sphi 0, %s418
      %s420 = sphi 0, %s418
      %s421 = sphi 0, %s420
      %s435 = sphi 0, %s421
      %s443 = sphi 0, %s445
      %s446 = sphi 0, %s443
      %s447 = sphi 0, %s446
      %s463 = sphi 0, %s447
    $region4: #{tpu_custom_call.1} parent=1 // loop_header_branch
      %32 = sbr.rel (%p30) target = $region8
    $region5: #{tpu_custom_call.1} parent=1 // loop_body
      %s34 = ssub.s32 %s29, 1
      %s35 = ssub.s32 %s29, 2
      %s42 = sadd.s32 1, %s37
      %p43 = scmp.ge.s32.totalorder %s42, 1
      %s44 = scalar_select %p43, 0, %s42
      %s45 = sadd.s32 1, %s36
      %s46 = scalar_select %p43, %s45, %s36
      %p47 = scmp.ge.s32.totalorder %s46, 2
      %s48 = scalar_select %p47, 0, %s46
      %s49 = ssub.s32 %s36, %s48
      %s50 = ssub.s32 %s37, %s44
      %s51 = sor.u32 %s49, %s50
      %p52 = scmp.eq.s32.totalorder %s51, 0
      %s54 = sadd.s32 %s53, 1
      %s55 = scalar_select %p52, %s53, %s54
      %p58 = pneg %p52
      %p59 = scmp.eq.s32.totalorder %s29, 1
      %p60 = por %p58, %p59
      %p61 = scmp.ne.s32.totalorder %s53, %s56
      %p62 = scmp.eq.s32.totalorder %s29, 0
      %p63 = por %p61, %p62
      %p64 = scmp.ne.s32.totalorder %s53, %s56
      %p65 = scmp.eq.s32.totalorder %s34, 1
      %p66 = por %p64, %p65
      %p67 = scmp.ne.s32.totalorder %s56, %s57
      %p68 = scmp.eq.s32.totalorder %s34, 0
      %p69 = por %p67, %p68
      %p70 = scmp.ne.s32.totalorder %s56, %s57
      %p71 = scmp.eq.s32.totalorder %s35, 1
      %p72 = por %p70, %p71
      %p74 = scmp.ne.s32.totalorder %s57, %s73
      %p75 = scmp.eq.s32.totalorder %s35, 0
      %p76 = por %p74, %p75
      %s77 = ssub.s32 %s36, %s48
      %p78 = scmp.eq.s32.totalorder %s77, 0
      %s80 = sadd.s32 %s79, 1
      %s81 = scalar_select %p78, %s79, %s80
      %p84 = pneg %p78
      %p85 = scmp.eq.s32.totalorder %s29, 1
      %p86 = por %p84, %p85
      %p87 = scmp.ne.s32.totalorder %s79, %s82
      %p88 = scmp.eq.s32.totalorder %s29, 0
      %p89 = por %p87, %p88
      %p90 = scmp.ne.s32.totalorder %s79, %s82
      %p91 = scmp.eq.s32.totalorder %s34, 1
      %p92 = por %p90, %p91
      %p93 = scmp.ne.s32.totalorder %s82, %s83
      %p94 = scmp.eq.s32.totalorder %s34, 0
      %p95 = por %p93, %p94
      %p96 = scmp.ne.s32.totalorder %s82, %s83
      %p97 = scmp.eq.s32.totalorder %s35, 1
      %p98 = por %p96, %p97
      %p100 = scmp.ne.s32.totalorder %s83, %s99
      %p101 = scmp.eq.s32.totalorder %s35, 0
      %p102 = por %p100, %p101
      %s104 = sadd.s32 %s103, 1
      %p107 = scmp.eq.s32.totalorder %s29, 1
      %p108 = scmp.ne.s32.totalorder %s103, %s105
      %p109 = scmp.eq.s32.totalorder %s29, 0
      %p110 = por %p108, %p109
      %p111 = scmp.ne.s32.totalorder %s103, %s105
      %p112 = scmp.eq.s32.totalorder %s34, 1
      %p113 = por %p111, %p112
      %p114 = scmp.ne.s32.totalorder %s105, %s106
      %p115 = scmp.eq.s32.totalorder %s34, 0
      %p116 = por %p114, %p115
      %p117 = scmp.ne.s32.totalorder %s105, %s106
      %p118 = scmp.eq.s32.totalorder %s35, 1
      %p119 = por %p117, %p118
      %p121 = scmp.ne.s32.totalorder %s106, %s120
      %p122 = scmp.eq.s32.totalorder %s35, 0
      %p123 = por %p121, %p122
      %s125 = sadd.s32 %s124, 1
      %p128 = scmp.eq.s32.totalorder %s29, 1
      %p129 = scmp.ne.s32.totalorder %s124, %s126
      %p130 = scmp.eq.s32.totalorder %s29, 0
      %p131 = por %p129, %p130
      %p132 = scmp.ne.s32.totalorder %s124, %s126
      %p133 = scmp.eq.s32.totalorder %s34, 1
      %p134 = por %p132, %p133
      %p135 = scmp.ne.s32.totalorder %s126, %s127
      %p136 = scmp.eq.s32.totalorder %s34, 0
      %p137 = por %p135, %p136
      %p138 = scmp.ne.s32.totalorder %s126, %s127
      %p139 = scmp.eq.s32.totalorder %s35, 1
      %p140 = por %p138, %p139
      %p142 = scmp.ne.s32.totalorder %s127, %s141
      %p143 = scmp.eq.s32.totalorder %s35, 0
      %p144 = por %p142, %p143
      %s146 = sadd.s32 %s145, 1
      %p149 = scmp.eq.s32.totalorder %s29, 1
      %p150 = scmp.ne.s32.totalorder %s145, %s147
      %p151 = scmp.eq.s32.totalorder %s29, 0
      %p152 = por %p150, %p151
      %p153 = scmp.ne.s32.totalorder %s145, %s147
      %p154 = scmp.eq.s32.totalorder %s34, 1
      %p155 = por %p153, %p154
      %p156 = scmp.ne.s32.totalorder %s147, %s148
      %p157 = scmp.eq.s32.totalorder %s34, 0
      %p158 = por %p156, %p157
      %p159 = scmp.ne.s32.totalorder %s147, %s148
      %p160 = scmp.eq.s32.totalorder %s35, 1
      %p161 = por %p159, %p160
      %p163 = scmp.ne.s32.totalorder %s148, %s162
      %p164 = scmp.eq.s32.totalorder %s35, 0
      %p165 = por %p163, %p164
      %s167 = sadd.s32 %s166, 1
      %p170 = scmp.eq.s32.totalorder %s29, 1
      %p171 = scmp.ne.s32.totalorder %s166, %s168
      %p172 = scmp.eq.s32.totalorder %s29, 0
      %p173 = por %p171, %p172
      %p174 = scmp.ne.s32.totalorder %s166, %s168
      %p175 = scmp.eq.s32.totalorder %s34, 1
      %p176 = por %p174, %p175
      %p177 = scmp.ne.s32.totalorder %s168, %s169
      %p178 = scmp.eq.s32.totalorder %s34, 0
      %p179 = por %p177, %p178
      %p180 = scmp.ne.s32.totalorder %s168, %s169
      %p181 = scmp.eq.s32.totalorder %s35, 1
      %p182 = por %p180, %p181
      %p184 = scmp.ne.s32.totalorder %s169, %s183
      %p185 = scmp.eq.s32.totalorder %s35, 0
      %p186 = por %p184, %p185
      %s188 = sadd.s32 %s187, 1
      %p191 = scmp.eq.s32.totalorder %s29, 1
      %p192 = scmp.ne.s32.totalorder %s187, %s189
      %p193 = scmp.eq.s32.totalorder %s29, 0
      %p194 = por %p192, %p193
      %p195 = scmp.ne.s32.totalorder %s187, %s189
      %p196 = scmp.eq.s32.totalorder %s34, 1
      %p197 = por %p195, %p196
      %p198 = scmp.ne.s32.totalorder %s189, %s190
      %p199 = scmp.eq.s32.totalorder %s34, 0
      %p200 = por %p198, %p199
      %p201 = scmp.ne.s32.totalorder %s189, %s190
      %p202 = scmp.eq.s32.totalorder %s35, 1
      %p203 = por %p201, %p202
      %p205 = scmp.ne.s32.totalorder %s190, %s204
      %p206 = scmp.eq.s32.totalorder %s35, 0
      %p207 = por %p205, %p206
      %s209 = sadd.s32 %s208, 1
      %p212 = scmp.eq.s32.totalorder %s29, 1
      %p213 = scmp.ne.s32.totalorder %s208, %s210
      %p214 = scmp.eq.s32.totalorder %s29, 0
      %p215 = por %p213, %p214
      %p216 = scmp.ne.s32.totalorder %s208, %s210
      %p217 = scmp.eq.s32.totalorder %s34, 1
      %p218 = por %p216, %p217
      %p219 = scmp.ne.s32.totalorder %s210, %s211
      %p220 = scmp.eq.s32.totalorder %s34, 0
      %p221 = por %p219, %p220
      %p222 = scmp.ne.s32.totalorder %s210, %s211
      %p223 = scmp.eq.s32.totalorder %s35, 1
      %p224 = por %p222, %p223
      %p226 = scmp.ne.s32.totalorder %s211, %s225
      %p227 = scmp.eq.s32.totalorder %s35, 0
      %p228 = por %p226, %p227
      %s230 = sadd.s32 %s229, 1
      %p233 = scmp.eq.s32.totalorder %s29, 1
      %p234 = scmp.ne.s32.totalorder %s229, %s231
      %p235 = scmp.eq.s32.totalorder %s29, 0
      %p236 = por %p234, %p235
      %p237 = scmp.ne.s32.totalorder %s229, %s231
      %p238 = scmp.eq.s32.totalorder %s34, 1
      %p239 = por %p237, %p238
      %p240 = scmp.ne.s32.totalorder %s231, %s232
      %p241 = scmp.eq.s32.totalorder %s34, 0
      %p242 = por %p240, %p241
      %p243 = scmp.ne.s32.totalorder %s231, %s232
      %p244 = scmp.eq.s32.totalorder %s35, 1
      %p245 = por %p243, %p244
      %p247 = scmp.ne.s32.totalorder %s232, %s246
      %p248 = scmp.eq.s32.totalorder %s35, 0
      %p249 = por %p247, %p248
      %s251 = sadd.s32 %s250, 1
      %p254 = scmp.eq.s32.totalorder %s29, 1
      %p255 = scmp.ne.s32.totalorder %s250, %s252
      %p256 = scmp.eq.s32.totalorder %s29, 0
      %p257 = por %p255, %p256
      %p258 = scmp.ne.s32.totalorder %s250, %s252
      %p259 = scmp.eq.s32.totalorder %s34, 1
      %p260 = por %p258, %p259
      %p261 = scmp.ne.s32.totalorder %s252, %s253
      %p262 = scmp.eq.s32.totalorder %s34, 0
      %p263 = por %p261, %p262
      %p264 = scmp.ne.s32.totalorder %s252, %s253
      %p265 = scmp.eq.s32.totalorder %s35, 1
      %p266 = por %p264, %p265
      %p268 = scmp.ne.s32.totalorder %s253, %s267
      %p269 = scmp.eq.s32.totalorder %s35, 0
      %p270 = por %p268, %p269
      %s272 = sadd.s32 %s271, 1
      %p275 = scmp.eq.s32.totalorder %s29, 1
      %p276 = scmp.ne.s32.totalorder %s271, %s273
      %p277 = scmp.eq.s32.totalorder %s29, 0
      %p278 = por %p276, %p277
      %p279 = scmp.ne.s32.totalorder %s271, %s273
      %p280 = scmp.eq.s32.totalorder %s34, 1
      %p281 = por %p279, %p280
      %p282 = scmp.ne.s32.totalorder %s273, %s274
      %p283 = scmp.eq.s32.totalorder %s34, 0
      %p284 = por %p282, %p283
      %p285 = scmp.ne.s32.totalorder %s273, %s274
      %p286 = scmp.eq.s32.totalorder %s35, 1
      %p287 = por %p285, %p286
      %p289 = scmp.ne.s32.totalorder %s274, %s288
      %p290 = scmp.eq.s32.totalorder %s35, 0
      %p291 = por %p289, %p290
      %s293 = sadd.s32 %s292, 1
      %p296 = scmp.eq.s32.totalorder %s29, 1
      %p297 = scmp.ne.s32.totalorder %s292, %s294
      %p298 = scmp.eq.s32.totalorder %s29, 0
      %p299 = por %p297, %p298
      %p300 = scmp.ne.s32.totalorder %s292, %s294
      %p301 = scmp.eq.s32.totalorder %s34, 1
      %p302 = por %p300, %p301
      %p303 = scmp.ne.s32.totalorder %s294, %s295
      %p304 = scmp.eq.s32.totalorder %s34, 0
      %p305 = por %p303, %p304
      %p306 = scmp.ne.s32.totalorder %s294, %s295
      %p307 = scmp.eq.s32.totalorder %s35, 1
      %p308 = por %p306, %p307
      %p310 = scmp.ne.s32.totalorder %s295, %s309
      %p311 = scmp.eq.s32.totalorder %s35, 0
      %p312 = por %p310, %p311
      %s314 = sadd.s32 %s313, 1
      %p317 = scmp.eq.s32.totalorder %s29, 1
      %p318 = scmp.ne.s32.totalorder %s313, %s315
      %p319 = scmp.eq.s32.totalorder %s29, 0
      %p320 = por %p318, %p319
      %p321 = scmp.ne.s32.totalorder %s313, %s315
      %p322 = scmp.eq.s32.totalorder %s34, 1
      %p323 = por %p321, %p322
      %p324 = scmp.ne.s32.totalorder %s315, %s316
      %p325 = scmp.eq.s32.totalorder %s34, 0
      %p326 = por %p324, %p325
      %p327 = scmp.ne.s32.totalorder %s315, %s316
      %p328 = scmp.eq.s32.totalorder %s35, 1
      %p329 = por %p327, %p328
      %p331 = scmp.ne.s32.totalorder %s316, %s330
      %p332 = scmp.eq.s32.totalorder %s35, 0
      %p333 = por %p331, %p332
      %s335 = sadd.s32 %s334, 1
      %p338 = scmp.eq.s32.totalorder %s29, 1
      %p339 = scmp.ne.s32.totalorder %s334, %s336
      %p340 = scmp.eq.s32.totalorder %s29, 0
      %p341 = por %p339, %p340
      %p342 = scmp.ne.s32.totalorder %s334, %s336
      %p343 = scmp.eq.s32.totalorder %s34, 1
      %p344 = por %p342, %p343
      %p345 = scmp.ne.s32.totalorder %s336, %s337
      %p346 = scmp.eq.s32.totalorder %s34, 0
      %p347 = por %p345, %p346
      %p348 = scmp.ne.s32.totalorder %s336, %s337
      %p349 = scmp.eq.s32.totalorder %s35, 1
      %p350 = por %p348, %p349
      %p352 = scmp.ne.s32.totalorder %s337, %s351
      %p353 = scmp.eq.s32.totalorder %s35, 0
      %p354 = por %p352, %p353
      %s356 = sadd.s32 %s355, 1
      %p359 = scmp.eq.s32.totalorder %s29, 1
      %p360 = scmp.ne.s32.totalorder %s355, %s357
      %p361 = scmp.eq.s32.totalorder %s29, 0
      %p362 = por %p360, %p361
      %p363 = scmp.ne.s32.totalorder %s355, %s357
      %p364 = scmp.eq.s32.totalorder %s34, 1
      %p365 = por %p363, %p364
      %p366 = scmp.ne.s32.totalorder %s357, %s358
      %p367 = scmp.eq.s32.totalorder %s34, 0
      %p368 = por %p366, %p367
      %p369 = scmp.ne.s32.totalorder %s357, %s358
      %p370 = scmp.eq.s32.totalorder %s35, 1
      %p371 = por %p369, %p370
      %p373 = scmp.ne.s32.totalorder %s358, %s372
      %p374 = scmp.eq.s32.totalorder %s35, 0
      %p375 = por %p373, %p374
      %s377 = sadd.s32 %s376, 1
      %p380 = scmp.eq.s32.totalorder %s29, 1
      %p381 = scmp.ne.s32.totalorder %s376, %s378
      %p382 = scmp.eq.s32.totalorder %s29, 0
      %p383 = por %p381, %p382
      %p384 = scmp.ne.s32.totalorder %s376, %s378
      %p385 = scmp.eq.s32.totalorder %s34, 1
      %p386 = por %p384, %p385
      %p387 = scmp.ne.s32.totalorder %s378, %s379
      %p388 = scmp.eq.s32.totalorder %s34, 0
      %p389 = por %p387, %p388
      %p390 = scmp.ne.s32.totalorder %s378, %s379
      %p391 = scmp.eq.s32.totalorder %s35, 1
      %p392 = por %p390, %p391
      %p394 = scmp.ne.s32.totalorder %s379, %s393
      %p395 = scmp.eq.s32.totalorder %s35, 0
      %p396 = por %p394, %p395
      %s398 = sadd.s32 %s397, 1
      %p401 = scmp.eq.s32.totalorder %s29, 1
      %p402 = scmp.ne.s32.totalorder %s397, %s399
      %p403 = scmp.eq.s32.totalorder %s29, 0
      %p404 = por %p402, %p403
      %p405 = scmp.ne.s32.totalorder %s397, %s399
      %p406 = scmp.eq.s32.totalorder %s34, 1
      %p407 = por %p405, %p406
      %p408 = scmp.ne.s32.totalorder %s399, %s400
      %p409 = scmp.eq.s32.totalorder %s34, 0
      %p410 = por %p408, %p409
      %p411 = scmp.ne.s32.totalorder %s399, %s400
      %p412 = scmp.eq.s32.totalorder %s35, 1
      %p413 = por %p411, %p412
      %p415 = scmp.ne.s32.totalorder %s400, %s414
      %p416 = scmp.eq.s32.totalorder %s35, 0
      %p417 = por %p415, %p416
      %s419 = sadd.s32 %s418, 1
      %p422 = scmp.eq.s32.totalorder %s29, 1
      %p423 = scmp.ne.s32.totalorder %s418, %s420
      %p424 = scmp.eq.s32.totalorder %s29, 0
      %p425 = por %p423, %p424
      %p426 = scmp.ne.s32.totalorder %s418, %s420
      %p427 = scmp.eq.s32.totalorder %s34, 1
      %p428 = por %p426, %p427
      %p429 = scmp.ne.s32.totalorder %s420, %s421
      %p430 = scmp.eq.s32.totalorder %s34, 0
      %p431 = por %p429, %p430
      %p432 = scmp.ne.s32.totalorder %s420, %s421
      %p433 = scmp.eq.s32.totalorder %s35, 1
      %p434 = por %p432, %p433
      %p436 = scmp.ne.s32.totalorder %s421, %s435
      %p437 = scmp.eq.s32.totalorder %s35, 0
      %p438 = por %p436, %p437
      %s439 = ssub.s32 %s36, %s48
      %s440 = ssub.s32 %s37, %s44
      %s441 = sor.u32 %s439, %s440
      %p442 = scmp.eq.s32.totalorder %s441, 0
      %s444 = sadd.s32 %s443, 1
      %s445 = scalar_select %p442, %s443, %s444
      %p448 = pneg %p442
      %p449 = scmp.eq.s32.totalorder %s29, 1
      %p450 = por %p448, %p449
      %p451 = scmp.ne.s32.totalorder %s443, %s446
      %p452 = scmp.eq.s32.totalorder %s29, 0
      %p453 = por %p451, %p452
      %p454 = scmp.ne.s32.totalorder %s443, %s446
      %p455 = scmp.eq.s32.totalorder %s34, 1
      %p456 = por %p454, %p455
      %p457 = scmp.ne.s32.totalorder %s446, %s447
      %p458 = scmp.eq.s32.totalorder %s34, 0
      %p459 = por %p457, %p458
      %p460 = scmp.ne.s32.totalorder %s446, %s447
      %p461 = scmp.eq.s32.totalorder %s35, 1
      %p462 = por %p460, %p461
      %p464 = scmp.ne.s32.totalorder %s447, %s463
      %p465 = scmp.eq.s32.totalorder %s35, 0
      %p466 = por %p464, %p465
      %p467 = scmp.le.s32.totalorder 1, %s29
      %p468 = scmp.lt.s32.totalorder %s29, 3
      %p469 = pnand %p467, %p468
      %p470 = pneg %p469
      // Predicated region
      $region9: #{tpu_custom_call.1} parent=5 // pred_check
        _
      $region10: #{tpu_custom_call.1} parent=5 // pred_check_branch
        %472 = sbr.rel (%p469) target = $region12
      $region11: #{tpu_custom_call.1} parent=5 // pred_region
        %s473 = ssub.s32 %s29, 1
        // Predicated region
        $region13: #{tpu_custom_call.1} parent=11 // pred_check
          %p474 = pneg %p116
        $region14: #{tpu_custom_call.1} parent=11 // pred_check_branch
          %476 = sbr.rel (%p474) target = $region16
        $region15: #{tpu_custom_call.1} parent=11 // pred_region
          _
        $region16: #{tpu_custom_call.1} parent=11 // pred_fallthru
          _
        // Predicated region
        $region17: #{tpu_custom_call.1} parent=11 // pred_check
          %p477 = pneg %p137
        $region18: #{tpu_custom_call.1} parent=11 // pred_check_branch
          %479 = sbr.rel (%p477) target = $region20
        $region19: #{tpu_custom_call.1} parent=11 // pred_region
          _
        $region20: #{tpu_custom_call.1} parent=11 // pred_fallthru
          _
        // Predicated region
        $region21: #{tpu_custom_call.1} parent=11 // pred_check
          %p480 = pneg %p158
        $region22: #{tpu_custom_call.1} parent=11 // pred_check_branch
          %482 = sbr.rel (%p480) target = $region24
        $region23: #{tpu_custom_call.1} parent=11 // pred_region
          _
        $region24: #{tpu_custom_call.1} parent=11 // pred_fallthru
          _
        // Predicated region
        $region25: #{tpu_custom_call.1} parent=11 // pred_check
          %p483 = pneg %p179
        $region26: #{tpu_custom_call.1} parent=11 // pred_check_branch
          %485 = sbr.rel (%p483) target = $region28
        $region27: #{tpu_custom_call.1} parent=11 // pred_region
          _
        $region28: #{tpu_custom_call.1} parent=11 // pred_fallthru
          _
        // Predicated region
        $region29: #{tpu_custom_call.1} parent=11 // pred_check
          %p486 = pneg %p200
        $region30: #{tpu_custom_call.1} parent=11 // pred_check_branch
          %488 = sbr.rel (%p486) target = $region32
        $region31: #{tpu_custom_call.1} parent=11 // pred_region
          _
        $region32: #{tpu_custom_call.1} parent=11 // pred_fallthru
          _
        // Predicated region
        $region33: #{tpu_custom_call.1} parent=11 // pred_check
          %p489 = pneg %p221
        $region34: #{tpu_custom_call.1} parent=11 // pred_check_branch
          %491 = sbr.rel (%p489) target = $region36
        $region35: #{tpu_custom_call.1} parent=11 // pred_region
          _
        $region36: #{tpu_custom_call.1} parent=11 // pred_fallthru
          _
        // Predicated region
        $region37: #{tpu_custom_call.1} parent=11 // pred_check
          %p492 = pneg %p242
        $region38: #{tpu_custom_call.1} parent=11 // pred_check_branch
          %494 = sbr.rel (%p492) target = $region40
        $region39: #{tpu_custom_call.1} parent=11 // pred_region
          _
        $region40: #{tpu_custom_call.1} parent=11 // pred_fallthru
          _
        // Predicated region
        $region41: #{tpu_custom_call.1} parent=11 // pred_check
          %p495 = pneg %p263
        $region42: #{tpu_custom_call.1} parent=11 // pred_check_branch
          %497 = sbr.rel (%p495) target = $region44
        $region43: #{tpu_custom_call.1} parent=11 // pred_region
          _
        $region44: #{tpu_custom_call.1} parent=11 // pred_fallthru
          _
        // Predicated region
        $region45: #{tpu_custom_call.1} parent=11 // pred_check
          %p498 = pneg %p284
        $region46: #{tpu_custom_call.1} parent=11 // pred_check_branch
          %500 = sbr.rel (%p498) target = $region48
        $region47: #{tpu_custom_call.1} parent=11 // pred_region
          %s502 = ssub.s32 256, 256
          %503 = vsyncadd [#allocation3], %s502
          %s504 = sshll.u32 [#allocation2], 4
          %s505 = int_to_ptr.vmem [resolvable:$true] %s504
          %510 = dma.hbm_to_vmem [thread:$0]  %s10, 256, %s505, [#allocation3], 64, 64, 4
        $region48: #{tpu_custom_call.1} parent=11 // pred_fallthru
          _
        // Predicated region
        $region49: #{tpu_custom_call.1} parent=11 // pred_check
          %p511 = pneg %p305
        $region50: #{tpu_custom_call.1} parent=11 // pred_check_branch
          %513 = sbr.rel (%p511) target = $region52
        $region51: #{tpu_custom_call.1} parent=11 // pred_region
          _
        $region52: #{tpu_custom_call.1} parent=11 // pred_fallthru
          _
        // Predicated region
        $region53: #{tpu_custom_call.1} parent=11 // pred_check
          %p514 = pneg %p326
        $region54: #{tpu_custom_call.1} parent=11 // pred_check_branch
          %516 = sbr.rel (%p514) target = $region56
        $region55: #{tpu_custom_call.1} parent=11 // pred_region
          _
        $region56: #{tpu_custom_call.1} parent=11 // pred_fallthru
          _
        // Predicated region
        $region57: #{tpu_custom_call.1} parent=11 // pred_check
          %p517 = pneg %p347
        $region58: #{tpu_custom_call.1} parent=11 // pred_check_branch
          %519 = sbr.rel (%p517) target = $region60
        $region59: #{tpu_custom_call.1} parent=11 // pred_region
          _
        $region60: #{tpu_custom_call.1} parent=11 // pred_fallthru
          _
        // Predicated region
        $region61: #{tpu_custom_call.1} parent=11 // pred_check
          %p520 = pneg %p368
        $region62: #{tpu_custom_call.1} parent=11 // pred_check_branch
          %522 = sbr.rel (%p520) target = $region64
        $region63: #{tpu_custom_call.1} parent=11 // pred_region
          %s524 = ssub.s32 256, 256
          %525 = vsyncadd [#allocation6], %s524
          %s526 = sshll.u32 [#allocation5], 4
          %s527 = int_to_ptr.vmem [resolvable:$true] %s526
          %532 = dma.hbm_to_vmem [thread:$0]  %s14, 256, %s527, [#allocation6], 64, 64, 4
        $region64: #{tpu_custom_call.1} parent=11 // pred_fallthru
          _
        // Predicated region
        $region65: #{tpu_custom_call.1} parent=11 // pred_check
          %p533 = pneg %p389
        $region66: #{tpu_custom_call.1} parent=11 // pred_check_branch
          %535 = sbr.rel (%p533) target = $region68
        $region67: #{tpu_custom_call.1} parent=11 // pred_region
          _
        $region68: #{tpu_custom_call.1} parent=11 // pred_fallthru
          _
        // Predicated region
        $region69: #{tpu_custom_call.1} parent=11 // pred_check
          %p536 = pneg %p410
        $region70: #{tpu_custom_call.1} parent=11 // pred_check_branch
          %538 = sbr.rel (%p536) target = $region72
        $region71: #{tpu_custom_call.1} parent=11 // pred_region
          _
        $region72: #{tpu_custom_call.1} parent=11 // pred_fallthru
          _
        // Predicated region
        $region73: #{tpu_custom_call.1} parent=11 // pred_check
          %p539 = pneg %p431
        $region74: #{tpu_custom_call.1} parent=11 // pred_check_branch
          %541 = sbr.rel (%p539) target = $region76
        $region75: #{tpu_custom_call.1} parent=11 // pred_region
          _
        $region76: #{tpu_custom_call.1} parent=11 // pred_fallthru
          _
      $region12: #{tpu_custom_call.1} parent=5 // pred_fallthru
        _
      %p542 = scmp.lt.s32.totalorder %s29, 2
      // Predicated region
      $region77: #{tpu_custom_call.1} parent=5 // pred_check
        %p543 = pneg %p542
      $region78: #{tpu_custom_call.1} parent=5 // pred_check_branch
        %545 = sbr.rel (%p543) target = $region80
      $region79: #{tpu_custom_call.1} parent=5 // pred_region
        // Predicated region
        $region81: #{tpu_custom_call.1} parent=79 // pred_check
          %p546 = pneg %p63
        $region82: #{tpu_custom_call.1} parent=79 // pred_check_branch
          %548 = sbr.rel (%p546) target = $region84
        $region83: #{tpu_custom_call.1} parent=79 // pred_region
          %p549 = scmp.lt.s32.totalorder %s36, 1
          %s550 = scalar_select %p549, %s36, 1
          %p551 = scmp.lt.s32.totalorder %s37, 0
          %s552 = scalar_select %p551, %s37, 0
          %s553 = sadd.s32 %s552, %s550
          %s554 = smul.addr %s553, 8
          %s555 = scalar_lea.vmem %s0, %s554
        $region84: #{tpu_custom_call.1} parent=79 // pred_fallthru
          _
        // Predicated region
        $region85: #{tpu_custom_call.1} parent=79 // pred_check
          %p556 = pneg %p89
        $region86: #{tpu_custom_call.1} parent=79 // pred_check_branch
          %558 = sbr.rel (%p556) target = $region88
        $region87: #{tpu_custom_call.1} parent=79 // pred_region
          %p559 = scmp.lt.s32.totalorder %s36, 1
          %s560 = scalar_select %p559, %s36, 1
          %s561 = smul.addr %s560, 8
          %s562 = scalar_lea.vmem %s1, %s561
        $region88: #{tpu_custom_call.1} parent=79 // pred_fallthru
          _
      $region80: #{tpu_custom_call.1} parent=5 // pred_fallthru
        _
      %p563 = scmp.le.s32.totalorder 1, %s29
      %p564 = scmp.lt.s32.totalorder %s29, 3
      %p565 = pnand %p563, %p564
      %p566 = pneg %p565
      // Predicated region
      $region89: #{tpu_custom_call.1} parent=5 // pred_check
        _
      $region90: #{tpu_custom_call.1} parent=5 // pred_check_branch
        %568 = sbr.rel (%p565) target = $region92
      $region91: #{tpu_custom_call.1} parent=5 // pred_region
        %s569 = ssub.s32 %s29, 1
        // Predicated region
        $region93: #{tpu_custom_call.1} parent=91 // pred_check
          %p570 = pneg %p284
        $region94: #{tpu_custom_call.1} parent=91 // pred_check_branch
          %572 = sbr.rel (%p570) target = $region96
        $region95: #{tpu_custom_call.1} parent=91 // pred_region
          %573 = dma.done [#allocation3], 256
        $region96: #{tpu_custom_call.1} parent=91 // pred_fallthru
          _
        // Predicated region
        $region97: #{tpu_custom_call.1} parent=91 // pred_check
          %p574 = pneg %p368
        $region98: #{tpu_custom_call.1} parent=91 // pred_check_branch
          %576 = sbr.rel (%p574) target = $region100
        $region99: #{tpu_custom_call.1} parent=91 // pred_region
          %577 = dma.done [#allocation6], 256
        $region100: #{tpu_custom_call.1} parent=91 // pred_fallthru
          _
        %p578 = scmp.lt.s32.totalorder %s38, 1
        %s579 = scalar_select %p578, %s38, 1
        %p580 = scmp.lt.s32.totalorder %s39, 0
        %s581 = scalar_select %p580, %s39, 0
        %s582 = sadd.s32 %s581, %s579
        %s583 = smul.addr %s582, 8
        %s584 = scalar_lea.vmem %s0, %s583
        %p585 = pneg %p69
        %p586 = pneg %p66
        %p587 = scmp.lt.s32.totalorder %s38, 1
        %s588 = scalar_select %p587, %s38, 1
        %s589 = smul.addr %s588, 8
        %s590 = scalar_lea.vmem %s1, %s589
        %p591 = pneg %p95
        %p592 = pneg %p92
        %p593 = pneg %p116
        %p594 = pneg %p113
        %p595 = pneg %p137
        %p596 = pneg %p134
        %p597 = pneg %p158
        %p598 = pneg %p155
        %p599 = pneg %p179
        %p600 = pneg %p176
        %p601 = pneg %p200
        %p602 = pneg %p197
        %p603 = pneg %p221
        %p604 = pneg %p218
        %p605 = pneg %p242
        %p606 = pneg %p239
        %p607 = pneg %p263
        %p608 = pneg %p260
        %p609 = pneg %p284
        %p610 = pneg %p281
        %p611 = pneg %p305
        %p612 = pneg %p302
        %p613 = pneg %p326
        %p614 = pneg %p323
        %p615 = pneg %p347
        %p616 = pneg %p344
        %p617 = pneg %p368
        %p618 = pneg %p365
        %p619 = pneg %p389
        %p620 = pneg %p386
        %p621 = pneg %p410
        %p622 = pneg %p407
        %p623 = pneg %p431
        %p624 = pneg %p428
        %p625 = pneg %p459
        %p626 = pneg %p456
        %s627 = sand.u32 %s446, 1
        %s628 = scalar_lea.sflag [#allocation4], %s627
        %s629 = sand.u32 %s446, 1
        %s630 = smul.addr %s629, 8
        %s631 = scalar_lea.vmem [#allocation7], %s630
        %p632 = scmp.lt.s32.totalorder %s38, 1
        %s633 = scalar_select %p632, %s38, 1
        %p634 = scmp.lt.s32.totalorder %s39, 0
        %s635 = scalar_select %p634, %s39, 0
        %s636 = sadd.s32 %s635, %s633
        %s637 = smul.addr %s636, 8
        %s638 = scalar_lea.vmem %s0, %s637
        %p639 = scmp.lt.s32.totalorder %s38, 1
        %s640 = scalar_select %p639, %s38, 1
        %s641 = smul.addr %s640, 8
        %s642 = scalar_lea.vmem %s1, %s641
        %v644 = vld [vmem:[%s638] sm:$0xff]
        %v645 = vld [vmem:[%s642] sm:$0xff]
        %v646 = vld [vmem:[%s2] sm:$0x1]
        %v647 = vld [vmem:[%s3] sm:$0x1]
        %vm648 = vcmask 261120
        %v649 = vsel %vm648, %v644, 0.0
        %650 = vadd.xlane.f32.xlu0 %v649
        %v651 = vpop.xlane.xlu0 %650
        %v652 = vrcp.pop 32.0
        %v653 = vmul.f32 %v651, %v652
        %v654 = vsub.f32 %v644, %v653
        %v655 = vmul.f32 %v654, %v654
        %v656 = vsel %vm648, %v655, 0.0
        %657 = vadd.xlane.f32.xlu0 %v656
        %v658 = vpop.xlane.xlu0 %657
        %v659 = vmul.f32 %v658, %v652
        %v660 = vadd.f32 %v659, 1e-05
        %v661 = vrsqrt.pop %v660
        %v662 = vmul.f32 %v654, %v661
        %v664 = vlaneseq
        %v665 = vshrl.u32 %v664, 7
        %v666 = vsub.s32 0, %v665
        %v667 = vrot.slane %v646, %v666
        %v669 = vmul.f32 %v662, %v667
        %v671 = vlaneseq
        %v672 = vshrl.u32 %v671, 7
        %v673 = vsub.s32 0, %v672
        %v674 = vrot.slane %v647, %v673
        %v676 = vadd.f32 %v669, %v674
        %v677 = vsel %vm648, %v645, 0.0
        %678 = vadd.xlane.f32.xlu0 %v677
        %v679 = vpop.xlane.xlu0 %678
        %v680 = vmul.f32 %v679, %v652
        %v681 = vsub.f32 %v645, %v680
        %v682 = vmul.f32 %v681, %v681
        %v683 = vsel %vm648, %v682, 0.0
        %684 = vadd.xlane.f32.xlu0 %v683
        %v685 = vpop.xlane.xlu0 %684
        %v686 = vmul.f32 %v685, %v652
        %v687 = vadd.f32 %v686, 1e-05
        %v688 = vrsqrt.pop %v687
        %v689 = vmul.f32 %v681, %v688
        %v690 = vmul.f32 %v689, %v667
        %v691 = vadd.f32 %v690, %v674
        %v692 = vpack.c.bf16 %v676, %v676
        %v693 = vld [vmem:[%s4] sm:$0xf]
        %v694 = vld [vmem:[%s4 + $0x4] sm:$0xf]
        %v695 = vld [vmem:[%s4 + $0x8] sm:$0xf]
        %v696 = vld [vmem:[%s4 + $0xc] sm:$0xf]
        %v697 = vld [vmem:[%s5] sm:$0x1]
        %v699 = vlaneseq
        %v700 = vshrl.u32 %v699, 7
        %v701 = vsub.s32 0, %v700
        %v702 = vrot.slane %v697, %v701
        %v708 = vunpack.c.l.b16 %v693
        %v709 = vunpack.c.l.b16 %v694
        %v710 = vunpack.c.l.b16 %v695
        %v711 = vunpack.c.l.b16 %v696
        %v712 = vpack.c.b16 %v709, %v708
        %v713 = vpack.c.b16 %v711, %v710
        %v717 = vsel %vm648, %v692, 0
        %719 = vmatprep.subr.bf16.mxu0 0
        %720 = vmatpush1.bf16.msra.mxu0 0
        %721 = vmatprep.subr.bf16.mxu0 0
        %722 = vmatpush1.bf16.msra.mxu0 0
        %723 = vmatprep.subr.bf16.mxu0 0
        %724 = vmatpush1.bf16.msra.mxu0 0
        %725 = vmatprep.subr.bf16.mxu0 0
        %726 = vmatpush1.bf16.msra.mxu0 0
        %727 = vmatprep.subr.bf16.mxu0 0
        %728 = vmatpush1.bf16.msra.mxu0 0
        %729 = vmatprep.subr.bf16.mxu0 0
        %730 = vmatpush1.bf16.msra.mxu0 0
        %731 = vmatprep.subr.bf16.mxu0 0
        %732 = vmatpush1.bf16.msra.mxu0 %v713
        %733 = vmatprep.subr.bf16.mxu0 0
        %734 = vmatpush1.bf16.msra.mxu0 %v712
        %735 = vmatprep.subr.bf16.mxu0 0
        %736 = vmatpush2.bf16.msra.mxu0 0
        %737 = vmatprep.subr.bf16.mxu0 0
        %738 = vmatpush2.bf16.msra.mxu0 0
        %739 = vmatprep.subr.bf16.mxu0 0
        %740 = vmatpush2.bf16.msra.mxu0 0
        %741 = vmatprep.subr.bf16.mxu0 0
        %742 = vmatpush2.bf16.msra.mxu0 0
        %743 = vmatprep.subr.bf16.mxu0 0
        %744 = vmatpush2.bf16.msra.mxu0 0
        %745 = vmatprep.subr.bf16.mxu0 0
        %746 = vmatpush2.bf16.msra.mxu0 0
        %747 = vmatprep.subr.bf16.mxu0 0
        %748 = vmatpush2.bf16.msra.mxu0 0
        %749 = vmatprep.subr.bf16.mxu0 0
        %750 = vmatpush2.bf16.msra.mxu0 0
        %751 = vmatprep.mubr.bf16.mxu0 0
        %752 = vmatmul.mubr.bf16.gmra.mxu0 %v717
        %v753 = vpop.f32.mrf.mxu0
        %v754 = vadd.f32 %v702, %v753
        %v755 = vpop.f32.mrf.mxu0
        %v756 = vpop.f32.mrf.mxu0
        %v757 = vpop.f32.mrf.mxu0
        %758 = vdwg.mxu0
        %v759 = vpack.c.bf16 %v691, %v691
        %v760 = vld [vmem:[%s6] sm:$0xf]
        %v761 = vld [vmem:[%s6 + $0x4] sm:$0xf]
        %v762 = vld [vmem:[%s6 + $0x8] sm:$0xf]
        %v763 = vld [vmem:[%s6 + $0xc] sm:$0xf]
        %v764 = vld [vmem:[%s7] sm:$0x1]
        %v766 = vlaneseq
        %v767 = vshrl.u32 %v766, 7
        %v768 = vsub.s32 0, %v767
        %v769 = vrot.slane %v764, %v768
        %v775 = vunpack.c.l.b16 %v760
        %v776 = vunpack.c.l.b16 %v761
        %v777 = vunpack.c.l.b16 %v762
        %v778 = vunpack.c.l.b16 %v763
        %v779 = vpack.c.b16 %v776, %v775
        %v780 = vpack.c.b16 %v778, %v777
        %v784 = vsel %vm648, %v759, 0
        %786 = vmatprep.subr.bf16.mxu0 0
        %787 = vmatpush1.bf16.msra.mxu0 0
        %788 = vmatprep.subr.bf16.mxu0 0
        %789 = vmatpush1.bf16.msra.mxu0 0
        %790 = vmatprep.subr.bf16.mxu0 0
        %791 = vmatpush1.bf16.msra.mxu0 0
        %792 = vmatprep.subr.bf16.mxu0 0
        %793 = vmatpush1.bf16.msra.mxu0 0
        %794 = vmatprep.subr.bf16.mxu0 0
        %795 = vmatpush1.bf16.msra.mxu0 0
        %796 = vmatprep.subr.bf16.mxu0 0
        %797 = vmatpush1.bf16.msra.mxu0 0
        %798 = vmatprep.subr.bf16.mxu0 0
        %799 = vmatpush1.bf16.msra.mxu0 %v780
        %800 = vmatprep.subr.bf16.mxu0 0
        %801 = vmatpush1.bf16.msra.mxu0 %v779
        %802 = vmatprep.subr.bf16.mxu0 0
        %803 = vmatpush2.bf16.msra.mxu0 0
        %804 = vmatprep.subr.bf16.mxu0 0
        %805 = vmatpush2.bf16.msra.mxu0 0
        %806 = vmatprep.subr.bf16.mxu0 0
        %807 = vmatpush2.bf16.msra.mxu0 0
        %808 = vmatprep.subr.bf16.mxu0 0
        %809 = vmatpush2.bf16.msra.mxu0 0
        %810 = vmatprep.subr.bf16.mxu0 0
        %811 = vmatpush2.bf16.msra.mxu0 0
        %812 = vmatprep.subr.bf16.mxu0 0
        %813 = vmatpush2.bf16.msra.mxu0 0
        %814 = vmatprep.subr.bf16.mxu0 0
        %815 = vmatpush2.bf16.msra.mxu0 0
        %816 = vmatprep.subr.bf16.mxu0 0
        %817 = vmatpush2.bf16.msra.mxu0 0
        %818 = vmatprep.mubr.bf16.mxu0 0
        %819 = vmatmul.mubr.bf16.gmra.mxu0 %v784
        %v820 = vpop.f32.mrf.mxu0
        %v821 = vadd.f32 %v769, %v820
        %v822 = vpop.f32.mrf.mxu0
        %v823 = vpop.f32.mrf.mxu0
        %v824 = vpop.f32.mrf.mxu0
        %825 = vdwg.mxu0
        %v826 = vld [vmem:[%s8] sm:$0xf]
        %v827 = vld [vmem:[%s8 + $0x4] sm:$0xf]
        %v828 = vld [vmem:[%s8 + $0x8] sm:$0xf]
        %v829 = vld [vmem:[%s8 + $0xc] sm:$0xf]
        %v830 = vld [vmem:[%s9] sm:$0x1]
        %v832 = vlaneseq
        %v833 = vshrl.u32 %v832, 7
        %v834 = vsub.s32 0, %v833
        %v835 = vrot.slane %v830, %v834
        %v841 = vunpack.c.l.b16 %v826
        %v842 = vunpack.c.l.b16 %v827
        %v843 = vunpack.c.l.b16 %v828
        %v844 = vunpack.c.l.b16 %v829
        %v845 = vpack.c.b16 %v842, %v841
        %v846 = vpack.c.b16 %v844, %v843
        %849 = vmatprep.subr.bf16.mxu0 0
        %850 = vmatpush1.bf16.msra.mxu0 0
        %851 = vmatprep.subr.bf16.mxu0 0
        %852 = vmatpush1.bf16.msra.mxu0 0
        %853 = vmatprep.subr.bf16.mxu0 0
        %854 = vmatpush1.bf16.msra.mxu0 0
        %855 = vmatprep.subr.bf16.mxu0 0
        %856 = vmatpush1.bf16.msra.mxu0 0
        %857 = vmatprep.subr.bf16.mxu0 0
        %858 = vmatpush1.bf16.msra.mxu0 0
        %859 = vmatprep.subr.bf16.mxu0 0
        %860 = vmatpush1.bf16.msra.mxu0 0
        %861 = vmatprep.subr.bf16.mxu0 0
        %862 = vmatpush1.bf16.msra.mxu0 %v846
        %863 = vmatprep.subr.bf16.mxu0 0
        %864 = vmatpush1.bf16.msra.mxu0 %v845
        %865 = vmatprep.subr.bf16.mxu0 0
        %866 = vmatpush2.bf16.msra.mxu0 0
        %867 = vmatprep.subr.bf16.mxu0 0
        %868 = vmatpush2.bf16.msra.mxu0 0
        %869 = vmatprep.subr.bf16.mxu0 0
        %870 = vmatpush2.bf16.msra.mxu0 0
        %871 = vmatprep.subr.bf16.mxu0 0
        %872 = vmatpush2.bf16.msra.mxu0 0
        %873 = vmatprep.subr.bf16.mxu0 0
        %874 = vmatpush2.bf16.msra.mxu0 0
        %875 = vmatprep.subr.bf16.mxu0 0
        %876 = vmatpush2.bf16.msra.mxu0 0
        %877 = vmatprep.subr.bf16.mxu0 0
        %878 = vmatpush2.bf16.msra.mxu0 0
        %879 = vmatprep.subr.bf16.mxu0 0
        %880 = vmatpush2.bf16.msra.mxu0 0
        %881 = vmatprep.mubr.bf16.mxu0 0
        %882 = vmatmul.mubr.bf16.gmra.mxu0 %v784
        %v883 = vpop.f32.mrf.mxu0
        %v884 = vadd.f32 %v835, %v883
        %v885 = vpop.f32.mrf.mxu0
        %v886 = vpop.f32.mrf.mxu0
        %v887 = vpop.f32.mrf.mxu0
        %888 = vdwg.mxu0
        %890 = vrot.lane.b32.xlu0 %v754, 120
        %v891 = vpop.permute.xlu0 %890
        %893 = vrot.lane.b32.xlu0 %v754, 112
        %v894 = vpop.permute.xlu0 %893
        %896 = vrot.lane.b32.xlu0 %v754, 104
        %v897 = vpop.permute.xlu0 %896
        %v899 = vcombine.low %v754, %v894
        %v900 = vcombine.high %v754, %v894
        %v902 = vunpack.c.l.s4 1983009808
        %v903 = vunpack.c.0.s8 %v902
        %v904 = vlaneseq
        %v905 = vshrl.u32 %v904, 7
        %v906 = vsub.s32 %v903, %v905
        %v907 = vrot.slane %v899, %v906
        %v909 = vunpack.c.l.s4 1983009808
        %v910 = vunpack.c.0.s8 %v909
        %v911 = vlaneseq
        %v912 = vshrl.u32 %v911, 7
        %v913 = vsub.s32 %v910, %v912
        %v914 = vrot.slane %v900, %v913
        %v915 = vcombine.low %v891, %v897
        %v916 = vcombine.high %v891, %v897
        %v918 = vunpack.c.l.s4 1983009808
        %v919 = vunpack.c.0.s8 %v918
        %v920 = vlaneseq
        %v921 = vshrl.u32 %v920, 7
        %v922 = vsub.s32 %v919, %v921
        %v923 = vrot.slane %v915, %v922
        %v925 = vunpack.c.l.s4 1983009808
        %v926 = vunpack.c.0.s8 %v925
        %v927 = vlaneseq
        %v928 = vshrl.u32 %v927, 7
        %v929 = vsub.s32 %v926, %v928
        %v930 = vrot.slane %v916, %v929
        %v931 = vcombine.low %v907, %v923
        %v932 = vcombine.high %v907, %v923
        %v934 = vunpack.c.l.s4 1934713408
        %v935 = vunpack.c.0.s8 %v934
        %v936 = vlaneseq
        %v937 = vshrl.u32 %v936, 7
        %v938 = vsub.s32 %v935, %v937
        %v939 = vrot.slane %v931, %v938
        %v941 = vunpack.c.l.s4 1934713408
        %v942 = vunpack.c.0.s8 %v941
        %v943 = vlaneseq
        %v944 = vshrl.u32 %v943, 7
        %v945 = vsub.s32 %v942, %v944
        %v946 = vrot.slane %v932, %v945
        %v947 = vcombine.low %v914, %v930
        %v948 = vcombine.high %v914, %v930
        %v950 = vunpack.c.l.s4 1934713408
        %v951 = vunpack.c.0.s8 %v950
        %v952 = vlaneseq
        %v953 = vshrl.u32 %v952, 7
        %v954 = vsub.s32 %v951, %v953
        %v955 = vrot.slane %v947, %v954
        %v957 = vunpack.c.l.s4 1934713408
        %v958 = vunpack.c.0.s8 %v957
        %v959 = vlaneseq
        %v960 = vshrl.u32 %v959, 7
        %v961 = vsub.s32 %v958, %v960
        %v962 = vrot.slane %v948, %v961
        %v963 = vcombine.high %v939, 0.0
        %v964 = vcombine.high %v946, 0.0
        %v965 = vcombine.high %v955, 0.0
        %v966 = vcombine.high %v962, 0.0
        %v967 = vcombine.low %v939, %v946
        %v969 = vunpack.c.l.s4 1983009808
        %v970 = vunpack.c.0.s8 %v969
        %v971 = vlaneseq
        %v972 = vshrl.u32 %v971, 7
        %v973 = vsub.s32 %v970, %v972
        %v974 = vrot.slane %v967, %v973
        %v975 = vcombine.low %v963, %v964
        %v977 = vunpack.c.l.s4 1983009808
        %v978 = vunpack.c.0.s8 %v977
        %v979 = vlaneseq
        %v980 = vshrl.u32 %v979, 7
        %v981 = vsub.s32 %v978, %v980
        %v982 = vrot.slane %v975, %v981
        %v983 = vcombine.low %v955, %v962
        %v985 = vunpack.c.l.s4 1983009808
        %v986 = vunpack.c.0.s8 %v985
        %v987 = vlaneseq
        %v988 = vshrl.u32 %v987, 7
        %v989 = vsub.s32 %v986, %v988
        %v990 = vrot.slane %v983, %v989
        %v991 = vcombine.low %v965, %v966
        %v993 = vunpack.c.l.s4 1983009808
        %v994 = vunpack.c.0.s8 %v993
        %v995 = vlaneseq
        %v996 = vshrl.u32 %v995, 7
        %v997 = vsub.s32 %v994, %v996
        %v998 = vrot.slane %v991, %v997
        %v999 = vcombine.low %v974, %v982
        %v1000 = vcombine.high %v974, %v982
        %v1002 = vunpack.c.l.s4 1934713408
        %v1003 = vunpack.c.0.s8 %v1002
        %v1004 = vlaneseq
        %v1005 = vshrl.u32 %v1004, 7
        %v1006 = vsub.s32 %v1003, %v1005
        %v1007 = vrot.slane %v999, %v1006
        %v1009 = vunpack.c.l.s4 1934713408
        %v1010 = vunpack.c.0.s8 %v1009
        %v1011 = vlaneseq
        %v1012 = vshrl.u32 %v1011, 7
        %v1013 = vsub.s32 %v1010, %v1012
        %v1014 = vrot.slane %v1000, %v1013
        %v1015 = vcombine.low %v990, %v998
        %v1016 = vcombine.high %v990, %v998
        %v1018 = vunpack.c.l.s4 1934713408
        %v1019 = vunpack.c.0.s8 %v1018
        %v1020 = vlaneseq
        %v1021 = vshrl.u32 %v1020, 7
        %v1022 = vsub.s32 %v1019, %v1021
        %v1023 = vrot.slane %v1015, %v1022
        %v1025 = vunpack.c.l.s4 1934713408
        %v1026 = vunpack.c.0.s8 %v1025
        %v1027 = vlaneseq
        %v1028 = vshrl.u32 %v1027, 7
        %v1029 = vsub.s32 %v1026, %v1028
        %v1030 = vrot.slane %v1016, %v1029
        %v1031 = vcombine.low %v1007, %v1023
        %v1032 = vcombine.high %v1007, %v1023
        %v1033 = vcombine.low %v1014, %v1030
        %v1034 = vcombine.high %v1014, %v1030
        %v1035 = vmul.f32 %v1031, 0.35355338
        %v1036 = vmul.f32 %v1032, 0.35355338
        %v1037 = vmul.f32 %v1033, 0.35355338
        %v1038 = vmul.f32 %v1034, 0.35355338
        %v1039 = vpack.c.bf16 %v1035, %v1035
        %v1040 = vpack.c.bf16 %v1036, %v1036
        %v1041 = vpack.c.bf16 %v1037, %v1037
        %v1042 = vpack.c.bf16 %v1038, %v1038
        %1044 = vrot.lane.b32.xlu0 %v821, 120
        %v1045 = vpop.permute.xlu0 %1044
        %1047 = vrot.lane.b32.xlu0 %v821, 112
        %v1048 = vpop.permute.xlu0 %1047
        %1050 = vrot.lane.b32.xlu0 %v821, 104
        %v1051 = vpop.permute.xlu0 %1050
        %v1053 = vcombine.low %v821, %v1048
        %v1054 = vcombine.high %v821, %v1048
        %v1056 = vunpack.c.l.s4 1983009808
        %v1057 = vunpack.c.0.s8 %v1056
        %v1058 = vlaneseq
        %v1059 = vshrl.u32 %v1058, 7
        %v1060 = vsub.s32 %v1057, %v1059
        %v1061 = vrot.slane %v1053, %v1060
        %v1063 = vunpack.c.l.s4 1983009808
        %v1064 = vunpack.c.0.s8 %v1063
        %v1065 = vlaneseq
        %v1066 = vshrl.u32 %v1065, 7
        %v1067 = vsub.s32 %v1064, %v1066
        %v1068 = vrot.slane %v1054, %v1067
        %v1069 = vcombine.low %v1045, %v1051
        %v1070 = vcombine.high %v1045, %v1051
        %v1072 = vunpack.c.l.s4 1983009808
        %v1073 = vunpack.c.0.s8 %v1072
        %v1074 = vlaneseq
        %v1075 = vshrl.u32 %v1074, 7
        %v1076 = vsub.s32 %v1073, %v1075
        %v1077 = vrot.slane %v1069, %v1076
        %v1079 = vunpack.c.l.s4 1983009808
        %v1080 = vunpack.c.0.s8 %v1079
        %v1081 = vlaneseq
        %v1082 = vshrl.u32 %v1081, 7
        %v1083 = vsub.s32 %v1080, %v1082
        %v1084 = vrot.slane %v1070, %v1083
        %v1085 = vcombine.low %v1061, %v1077
        %v1086 = vcombine.high %v1061, %v1077
        %v1088 = vunpack.c.l.s4 1934713408
        %v1089 = vunpack.c.0.s8 %v1088
        %v1090 = vlaneseq
        %v1091 = vshrl.u32 %v1090, 7
        %v1092 = vsub.s32 %v1089, %v1091
        %v1093 = vrot.slane %v1085, %v1092
        %v1095 = vunpack.c.l.s4 1934713408
        %v1096 = vunpack.c.0.s8 %v1095
        %v1097 = vlaneseq
        %v1098 = vshrl.u32 %v1097, 7
        %v1099 = vsub.s32 %v1096, %v1098
        %v1100 = vrot.slane %v1086, %v1099
        %v1101 = vcombine.low %v1068, %v1084
        %v1102 = vcombine.high %v1068, %v1084
        %v1104 = vunpack.c.l.s4 1934713408
        %v1105 = vunpack.c.0.s8 %v1104
        %v1106 = vlaneseq
        %v1107 = vshrl.u32 %v1106, 7
        %v1108 = vsub.s32 %v1105, %v1107
        %v1109 = vrot.slane %v1101, %v1108
        %v1111 = vunpack.c.l.s4 1934713408
        %v1112 = vunpack.c.0.s8 %v1111
        %v1113 = vlaneseq
        %v1114 = vshrl.u32 %v1113, 7
        %v1115 = vsub.s32 %v1112, %v1114
        %v1116 = vrot.slane %v1102, %v1115
        %v1117 = vcombine.high %v1093, 0.0
        %v1118 = vcombine.high %v1100, 0.0
        %v1119 = vcombine.high %v1109, 0.0
        %v1120 = vcombine.high %v1116, 0.0
        %v1121 = vcombine.low %v1093, %v1100
        %v1123 = vunpack.c.l.s4 1983009808
        %v1124 = vunpack.c.0.s8 %v1123
        %v1125 = vlaneseq
        %v1126 = vshrl.u32 %v1125, 7
        %v1127 = vsub.s32 %v1124, %v1126
        %v1128 = vrot.slane %v1121, %v1127
        %v1129 = vcombine.low %v1117, %v1118
        %v1131 = vunpack.c.l.s4 1983009808
        %v1132 = vunpack.c.0.s8 %v1131
        %v1133 = vlaneseq
        %v1134 = vshrl.u32 %v1133, 7
        %v1135 = vsub.s32 %v1132, %v1134
        %v1136 = vrot.slane %v1129, %v1135
        %v1137 = vcombine.low %v1109, %v1116
        %v1139 = vunpack.c.l.s4 1983009808
        %v1140 = vunpack.c.0.s8 %v1139
        %v1141 = vlaneseq
        %v1142 = vshrl.u32 %v1141, 7
        %v1143 = vsub.s32 %v1140, %v1142
        %v1144 = vrot.slane %v1137, %v1143
        %v1145 = vcombine.low %v1119, %v1120
        %v1147 = vunpack.c.l.s4 1983009808
        %v1148 = vunpack.c.0.s8 %v1147
        %v1149 = vlaneseq
        %v1150 = vshrl.u32 %v1149, 7
        %v1151 = vsub.s32 %v1148, %v1150
        %v1152 = vrot.slane %v1145, %v1151
        %v1153 = vcombine.low %v1128, %v1136
        %v1154 = vcombine.high %v1128, %v1136
        %v1156 = vunpack.c.l.s4 1934713408
        %v1157 = vunpack.c.0.s8 %v1156
        %v1158 = vlaneseq
        %v1159 = vshrl.u32 %v1158, 7
        %v1160 = vsub.s32 %v1157, %v1159
        %v1161 = vrot.slane %v1153, %v1160
        %v1163 = vunpack.c.l.s4 1934713408
        %v1164 = vunpack.c.0.s8 %v1163
        %v1165 = vlaneseq
        %v1166 = vshrl.u32 %v1165, 7
        %v1167 = vsub.s32 %v1164, %v1166
        %v1168 = vrot.slane %v1154, %v1167
        %v1169 = vcombine.low %v1144, %v1152
        %v1170 = vcombine.high %v1144, %v1152
        %v1172 = vunpack.c.l.s4 1934713408
        %v1173 = vunpack.c.0.s8 %v1172
        %v1174 = vlaneseq
        %v1175 = vshrl.u32 %v1174, 7
        %v1176 = vsub.s32 %v1173, %v1175
        %v1177 = vrot.slane %v1169, %v1176
        %v1179 = vunpack.c.l.s4 1934713408
        %v1180 = vunpack.c.0.s8 %v1179
        %v1181 = vlaneseq
        %v1182 = vshrl.u32 %v1181, 7
        %v1183 = vsub.s32 %v1180, %v1182
        %v1184 = vrot.slane %v1170, %v1183
        %v1185 = vcombine.low %v1161, %v1177
        %v1186 = vcombine.high %v1161, %v1177
        %v1187 = vcombine.low %v1168, %v1184
        %v1188 = vcombine.high %v1168, %v1184
        %v1189 = vpack.c.bf16 %v1185, %v1185
        %v1190 = vpack.c.bf16 %v1186, %v1186
        %v1191 = vpack.c.bf16 %v1187, %v1187
        %v1192 = vpack.c.bf16 %v1188, %v1188
        %1194 = vrot.lane.b32.xlu0 %v884, 120
        %v1195 = vpop.permute.xlu0 %1194
        %1197 = vrot.lane.b32.xlu0 %v884, 112
        %v1198 = vpop.permute.xlu0 %1197
        %1200 = vrot.lane.b32.xlu0 %v884, 104
        %v1201 = vpop.permute.xlu0 %1200
        %v1203 = vcombine.low %v884, %v1198
        %v1204 = vcombine.high %v884, %v1198
        %v1206 = vunpack.c.l.s4 1983009808
        %v1207 = vunpack.c.0.s8 %v1206
        %v1208 = vlaneseq
        %v1209 = vshrl.u32 %v1208, 7
        %v1210 = vsub.s32 %v1207, %v1209
        %v1211 = vrot.slane %v1203, %v1210
        %v1213 = vunpack.c.l.s4 1983009808
        %v1214 = vunpack.c.0.s8 %v1213
        %v1215 = vlaneseq
        %v1216 = vshrl.u32 %v1215, 7
        %v1217 = vsub.s32 %v1214, %v1216
        %v1218 = vrot.slane %v1204, %v1217
        %v1219 = vcombine.low %v1195, %v1201
        %v1220 = vcombine.high %v1195, %v1201
        %v1222 = vunpack.c.l.s4 1983009808
        %v1223 = vunpack.c.0.s8 %v1222
        %v1224 = vlaneseq
        %v1225 = vshrl.u32 %v1224, 7
        %v1226 = vsub.s32 %v1223, %v1225
        %v1227 = vrot.slane %v1219, %v1226
        %v1229 = vunpack.c.l.s4 1983009808
        %v1230 = vunpack.c.0.s8 %v1229
        %v1231 = vlaneseq
        %v1232 = vshrl.u32 %v1231, 7
        %v1233 = vsub.s32 %v1230, %v1232
        %v1234 = vrot.slane %v1220, %v1233
        %v1235 = vcombine.low %v1211, %v1227
        %v1236 = vcombine.high %v1211, %v1227
        %v1238 = vunpack.c.l.s4 1934713408
        %v1239 = vunpack.c.0.s8 %v1238
        %v1240 = vlaneseq
        %v1241 = vshrl.u32 %v1240, 7
        %v1242 = vsub.s32 %v1239, %v1241
        %v1243 = vrot.slane %v1235, %v1242
        %v1245 = vunpack.c.l.s4 1934713408
        %v1246 = vunpack.c.0.s8 %v1245
        %v1247 = vlaneseq
        %v1248 = vshrl.u32 %v1247, 7
        %v1249 = vsub.s32 %v1246, %v1248
        %v1250 = vrot.slane %v1236, %v1249
        %v1251 = vcombine.low %v1218, %v1234
        %v1252 = vcombine.high %v1218, %v1234
        %v1254 = vunpack.c.l.s4 1934713408
        %v1255 = vunpack.c.0.s8 %v1254
        %v1256 = vlaneseq
        %v1257 = vshrl.u32 %v1256, 7
        %v1258 = vsub.s32 %v1255, %v1257
        %v1259 = vrot.slane %v1251, %v1258
        %v1261 = vunpack.c.l.s4 1934713408
        %v1262 = vunpack.c.0.s8 %v1261
        %v1263 = vlaneseq
        %v1264 = vshrl.u32 %v1263, 7
        %v1265 = vsub.s32 %v1262, %v1264
        %v1266 = vrot.slane %v1252, %v1265
        %v1267 = vcombine.high %v1243, 0.0
        %v1268 = vcombine.high %v1250, 0.0
        %v1269 = vcombine.high %v1259, 0.0
        %v1270 = vcombine.high %v1266, 0.0
        %v1271 = vcombine.low %v1243, %v1250
        %v1273 = vunpack.c.l.s4 1983009808
        %v1274 = vunpack.c.0.s8 %v1273
        %v1275 = vlaneseq
        %v1276 = vshrl.u32 %v1275, 7
        %v1277 = vsub.s32 %v1274, %v1276
        %v1278 = vrot.slane %v1271, %v1277
        %v1279 = vcombine.low %v1267, %v1268
        %v1281 = vunpack.c.l.s4 1983009808
        %v1282 = vunpack.c.0.s8 %v1281
        %v1283 = vlaneseq
        %v1284 = vshrl.u32 %v1283, 7
        %v1285 = vsub.s32 %v1282, %v1284
        %v1286 = vrot.slane %v1279, %v1285
        %v1287 = vcombine.low %v1259, %v1266
        %v1289 = vunpack.c.l.s4 1983009808
        %v1290 = vunpack.c.0.s8 %v1289
        %v1291 = vlaneseq
        %v1292 = vshrl.u32 %v1291, 7
        %v1293 = vsub.s32 %v1290, %v1292
        %v1294 = vrot.slane %v1287, %v1293
        %v1295 = vcombine.low %v1269, %v1270
        %v1297 = vunpack.c.l.s4 1983009808
        %v1298 = vunpack.c.0.s8 %v1297
        %v1299 = vlaneseq
        %v1300 = vshrl.u32 %v1299, 7
        %v1301 = vsub.s32 %v1298, %v1300
        %v1302 = vrot.slane %v1295, %v1301
        %v1303 = vcombine.low %v1278, %v1286
        %v1304 = vcombine.high %v1278, %v1286
        %v1306 = vunpack.c.l.s4 1934713408
        %v1307 = vunpack.c.0.s8 %v1306
        %v1308 = vlaneseq
        %v1309 = vshrl.u32 %v1308, 7
        %v1310 = vsub.s32 %v1307, %v1309
        %v1311 = vrot.slane %v1303, %v1310
        %v1313 = vunpack.c.l.s4 1934713408
        %v1314 = vunpack.c.0.s8 %v1313
        %v1315 = vlaneseq
        %v1316 = vshrl.u32 %v1315, 7
        %v1317 = vsub.s32 %v1314, %v1316
        %v1318 = vrot.slane %v1304, %v1317
        %v1319 = vcombine.low %v1294, %v1302
        %v1320 = vcombine.high %v1294, %v1302
        %v1322 = vunpack.c.l.s4 1934713408
        %v1323 = vunpack.c.0.s8 %v1322
        %v1324 = vlaneseq
        %v1325 = vshrl.u32 %v1324, 7
        %v1326 = vsub.s32 %v1323, %v1325
        %v1327 = vrot.slane %v1319, %v1326
        %v1329 = vunpack.c.l.s4 1934713408
        %v1330 = vunpack.c.0.s8 %v1329
        %v1331 = vlaneseq
        %v1332 = vshrl.u32 %v1331, 7
        %v1333 = vsub.s32 %v1330, %v1332
        %v1334 = vrot.slane %v1320, %v1333
        %v1335 = vcombine.low %v1311, %v1327
        %v1336 = vcombine.high %v1311, %v1327
        %v1337 = vcombine.low %v1318, %v1334
        %v1338 = vcombine.high %v1318, %v1334
        %v1339 = vpack.c.bf16 %v1335, %v1335
        %v1340 = vpack.c.bf16 %v1336, %v1336
        %v1341 = vpack.c.bf16 %v1337, %v1337
        %v1342 = vpack.c.bf16 %v1338, %v1338
        %vm1343 = vcmask 64512
        %v1345 = vsel %vm1343, %v1039, 0
        %v1348 = vsel %vm1343, %v1189, 0
        %1350 = vmatprep.subr.bf16.mxu0 0
        %1351 = vmatpush1.bf16.xpose.msra.mxu0 0
        %1352 = vmatprep.subr.bf16.mxu0 0
        %1353 = vmatpush1.bf16.xpose.msra.mxu0 0
        %1354 = vmatprep.subr.bf16.mxu0 0
        %1355 = vmatpush1.bf16.xpose.msra.mxu0 0
        %1356 = vmatprep.subr.bf16.mxu0 0
        %1357 = vmatpush1.bf16.xpose.msra.mxu0 0
        %1358 = vmatprep.subr.bf16.mxu0 0
        %1359 = vmatpush1.bf16.xpose.msra.mxu0 0
        %1360 = vmatprep.subr.bf16.mxu0 0
        %1361 = vmatpush1.bf16.xpose.msra.mxu0 0
        %1362 = vmatprep.subr.bf16.mxu0 0
        %1363 = vmatpush1.bf16.xpose.msra.mxu0 0
        %1364 = vmatprep.subr.bf16.mxu0 0
        %1365 = vmatpush1.bf16.xpose.msra.mxu0 %v1348
        %1366 = vmatprep.subr.bf16.mxu0 0
        %1367 = vmatpush2.bf16.xpose.msra.mxu0 0
        %1368 = vmatprep.subr.bf16.mxu0 0
        %1369 = vmatpush2.bf16.xpose.msra.mxu0 0
        %1370 = vmatprep.subr.bf16.mxu0 0
        %1371 = vmatpush2.bf16.xpose.msra.mxu0 0
        %1372 = vmatprep.subr.bf16.mxu0 0
        %1373 = vmatpush2.bf16.xpose.msra.mxu0 0
        %1374 = vmatprep.subr.bf16.mxu0 0
        %1375 = vmatpush2.bf16.xpose.msra.mxu0 0
        %1376 = vmatprep.subr.bf16.mxu0 0
        %1377 = vmatpush2.bf16.xpose.msra.mxu0 0
        %1378 = vmatprep.subr.bf16.mxu0 0
        %1379 = vmatpush2.bf16.xpose.msra.mxu0 0
        %1380 = vmatprep.subr.bf16.mxu0 0
        %1381 = vmatpush2.bf16.xpose.msra.mxu0 0
        %1382 = vmatprep.mubr.bf16.mxu0 0
        %1383 = vmatmul.mubr.bf16.gmra.mxu0 %v1345
        %v1384 = vpop.f32.mrf.mxu0
        %v1385 = vadd.f32 0.0, %v1384
        %v1386 = vpop.f32.mrf.mxu0
        %v1387 = vpop.f32.mrf.mxu0
        %v1388 = vpop.f32.mrf.mxu0
        %1389 = vdwg.mxu0
        %v1391 = vsel %vm1343, %v1040, 0
        %v1394 = vsel %vm1343, %v1190, 0
        %1396 = vmatprep.subr.bf16.mxu0 0
        %1397 = vmatpush1.bf16.xpose.msra.mxu0 0
        %1398 = vmatprep.subr.bf16.mxu0 0
        %1399 = vmatpush1.bf16.xpose.msra.mxu0 0
        %1400 = vmatprep.subr.bf16.mxu0 0
        %1401 = vmatpush1.bf16.xpose.msra.mxu0 0
        %1402 = vmatprep.subr.bf16.mxu0 0
        %1403 = vmatpush1.bf16.xpose.msra.mxu0 0
        %1404 = vmatprep.subr.bf16.mxu0 0
        %1405 = vmatpush1.bf16.xpose.msra.mxu0 0
        %1406 = vmatprep.subr.bf16.mxu0 0
        %1407 = vmatpush1.bf16.xpose.msra.mxu0 0
        %1408 = vmatprep.subr.bf16.mxu0 0
        %1409 = vmatpush1.bf16.xpose.msra.mxu0 0
        %1410 = vmatprep.subr.bf16.mxu0 0
        %1411 = vmatpush1.bf16.xpose.msra.mxu0 %v1394
        %1412 = vmatprep.subr.bf16.mxu0 0
        %1413 = vmatpush2.bf16.xpose.msra.mxu0 0
        %1414 = vmatprep.subr.bf16.mxu0 0
        %1415 = vmatpush2.bf16.xpose.msra.mxu0 0
        %1416 = vmatprep.subr.bf16.mxu0 0
        %1417 = vmatpush2.bf16.xpose.msra.mxu0 0
        %1418 = vmatprep.subr.bf16.mxu0 0
        %1419 = vmatpush2.bf16.xpose.msra.mxu0 0
        %1420 = vmatprep.subr.bf16.mxu0 0
        %1421 = vmatpush2.bf16.xpose.msra.mxu0 0
        %1422 = vmatprep.subr.bf16.mxu0 0
        %1423 = vmatpush2.bf16.xpose.msra.mxu0 0
        %1424 = vmatprep.subr.bf16.mxu0 0
        %1425 = vmatpush2.bf16.xpose.msra.mxu0 0
        %1426 = vmatprep.subr.bf16.mxu0 0
        %1427 = vmatpush2.bf16.xpose.msra.mxu0 0
        %1428 = vmatprep.mubr.bf16.mxu0 0
        %1429 = vmatmul.mubr.bf16.gmra.mxu0 %v1391
        %v1430 = vpop.f32.mrf.mxu0
        %v1431 = vadd.f32 0.0, %v1430
        %v1432 = vpop.f32.mrf.mxu0
        %v1433 = vpop.f32.mrf.mxu0
        %v1434 = vpop.f32.mrf.mxu0
        %1435 = vdwg.mxu0
        %v1437 = vsel %vm1343, %v1041, 0
        %v1440 = vsel %vm1343, %v1191, 0
        %1442 = vmatprep.subr.bf16.mxu0 0
        %1443 = vmatpush1.bf16.xpose.msra.mxu0 0
        %1444 = vmatprep.subr.bf16.mxu0 0
        %1445 = vmatpush1.bf16.xpose.msra.mxu0 0
        %1446 = vmatprep.subr.bf16.mxu0 0
        %1447 = vmatpush1.bf16.xpose.msra.mxu0 0
        %1448 = vmatprep.subr.bf16.mxu0 0
        %1449 = vmatpush1.bf16.xpose.msra.mxu0 0
        %1450 = vmatprep.subr.bf16.mxu0 0
        %1451 = vmatpush1.bf16.xpose.msra.mxu0 0
        %1452 = vmatprep.subr.bf16.mxu0 0
        %1453 = vmatpush1.bf16.xpose.msra.mxu0 0
        %1454 = vmatprep.subr.bf16.mxu0 0
        %1455 = vmatpush1.bf16.xpose.msra.mxu0 0
        %1456 = vmatprep.subr.bf16.mxu0 0
        %1457 = vmatpush1.bf16.xpose.msra.mxu0 %v1440
        %1458 = vmatprep.subr.bf16.mxu0 0
        %1459 = vmatpush2.bf16.xpose.msra.mxu0 0
        %1460 = vmatprep.subr.bf16.mxu0 0
        %1461 = vmatpush2.bf16.xpose.msra.mxu0 0
        %1462 = vmatprep.subr.bf16.mxu0 0
        %1463 = vmatpush2.bf16.xpose.msra.mxu0 0
        %1464 = vmatprep.subr.bf16.mxu0 0
        %1465 = vmatpush2.bf16.xpose.msra.mxu0 0
        %1466 = vmatprep.subr.bf16.mxu0 0
        %1467 = vmatpush2.bf16.xpose.msra.mxu0 0
        %1468 = vmatprep.subr.bf16.mxu0 0
        %1469 = vmatpush2.bf16.xpose.msra.mxu0 0
        %1470 = vmatprep.subr.bf16.mxu0 0
        %1471 = vmatpush2.bf16.xpose.msra.mxu0 0
        %1472 = vmatprep.subr.bf16.mxu0 0
        %1473 = vmatpush2.bf16.xpose.msra.mxu0 0
        %1474 = vmatprep.mubr.bf16.mxu0 0
        %1475 = vmatmul.mubr.bf16.gmra.mxu0 %v1437
        %v1476 = vpop.f32.mrf.mxu0
        %v1477 = vadd.f32 0.0, %v1476
        %v1478 = vpop.f32.mrf.mxu0
        %v1479 = vpop.f32.mrf.mxu0
        %v1480 = vpop.f32.mrf.mxu0
        %1481 = vdwg.mxu0
        %v1483 = vsel %vm1343, %v1042, 0
        %v1486 = vsel %vm1343, %v1192, 0
        %1488 = vmatprep.subr.bf16.mxu0 0
        %1489 = vmatpush1.bf16.xpose.msra.mxu0 0
        %1490 = vmatprep.subr.bf16.mxu0 0
        %1491 = vmatpush1.bf16.xpose.msra.mxu0 0
        %1492 = vmatprep.subr.bf16.mxu0 0
        %1493 = vmatpush1.bf16.xpose.msra.mxu0 0
        %1494 = vmatprep.subr.bf16.mxu0 0
        %1495 = vmatpush1.bf16.xpose.msra.mxu0 0
        %1496 = vmatprep.subr.bf16.mxu0 0
        %1497 = vmatpush1.bf16.xpose.msra.mxu0 0
        %1498 = vmatprep.subr.bf16.mxu0 0
        %1499 = vmatpush1.bf16.xpose.msra.mxu0 0
        %1500 = vmatprep.subr.bf16.mxu0 0
        %1501 = vmatpush1.bf16.xpose.msra.mxu0 0
        %1502 = vmatprep.subr.bf16.mxu0 0
        %1503 = vmatpush1.bf16.xpose.msra.mxu0 %v1486
        %1504 = vmatprep.subr.bf16.mxu0 0
        %1505 = vmatpush2.bf16.xpose.msra.mxu0 0
        %1506 = vmatprep.subr.bf16.mxu0 0
        %1507 = vmatpush2.bf16.xpose.msra.mxu0 0
        %1508 = vmatprep.subr.bf16.mxu0 0
        %1509 = vmatpush2.bf16.xpose.msra.mxu0 0
        %1510 = vmatprep.subr.bf16.mxu0 0
        %1511 = vmatpush2.bf16.xpose.msra.mxu0 0
        %1512 = vmatprep.subr.bf16.mxu0 0
        %1513 = vmatpush2.bf16.xpose.msra.mxu0 0
        %1514 = vmatprep.subr.bf16.mxu0 0
        %1515 = vmatpush2.bf16.xpose.msra.mxu0 0
        %1516 = vmatprep.subr.bf16.mxu0 0
        %1517 = vmatpush2.bf16.xpose.msra.mxu0 0
        %1518 = vmatprep.subr.bf16.mxu0 0
        %1519 = vmatpush2.bf16.xpose.msra.mxu0 0
        %1520 = vmatprep.mubr.bf16.mxu0 0
        %1521 = vmatmul.mubr.bf16.gmra.mxu0 %v1483
        %v1522 = vpop.f32.mrf.mxu0
        %v1523 = vadd.f32 0.0, %v1522
        %v1524 = vpop.f32.mrf.mxu0
        %v1525 = vpop.f32.mrf.mxu0
        %v1526 = vpop.f32.mrf.mxu0
        %1527 = vdwg.mxu0
        %v1528 = vsel %vm1343, %v1385, -inf
        %1529 = vmax.xlane.f32.xlu0 %v1528
        %v1530 = vpop.xlane.xlu0 %1529
        %v1531 = vsel %vm1343, %v1431, -inf
        %1532 = vmax.xlane.f32.xlu0 %v1531
        %v1533 = vpop.xlane.xlu0 %1532
        %v1534 = vsel %vm1343, %v1477, -inf
        %1535 = vmax.xlane.f32.xlu0 %v1534
        %v1536 = vpop.xlane.xlu0 %1535
        %v1537 = vsel %vm1343, %v1523, -inf
        %1538 = vmax.xlane.f32.xlu0 %v1537
        %v1539 = vpop.xlane.xlu0 %1538
        %v1540 = vsub.f32 %v1385, %v1530
        %v1541 = vsub.f32 %v1431, %v1533
        %v1542 = vsub.f32 %v1477, %v1536
        %v1543 = vsub.f32 %v1523, %v1539
        %v1544 = vmul.f32 %v1540, 1.442695
        %v1545 = vpow.pop %v1544
        %v1546 = vmul.f32 %v1541, 1.442695
        %v1547 = vpow.pop %v1546
        %v1548 = vmul.f32 %v1542, 1.442695
        %v1549 = vpow.pop %v1548
        %v1550 = vmul.f32 %v1543, 1.442695
        %v1551 = vpow.pop %v1550
        %v1552 = vsel %vm1343, %v1545, 0.0
        %1553 = vadd.xlane.f32.xlu0 %v1552
        %v1554 = vpop.xlane.xlu0 %1553
        %v1555 = vsel %vm1343, %v1547, 0.0
        %1556 = vadd.xlane.f32.xlu0 %v1555
        %v1557 = vpop.xlane.xlu0 %1556
        %v1558 = vsel %vm1343, %v1549, 0.0
        %1559 = vadd.xlane.f32.xlu0 %v1558
        %v1560 = vpop.xlane.xlu0 %1559
        %v1561 = vsel %vm1343, %v1551, 0.0
        %1562 = vadd.xlane.f32.xlu0 %v1561
        %v1563 = vpop.xlane.xlu0 %1562
        %v1564 = vrcp.pop %v1554
        %v1565 = vrcp.pop %v1557
        %v1566 = vrcp.pop %v1560
        %v1567 = vrcp.pop %v1563
        %v1568 = vmul.f32 %v1545, %v1564
        %v1569 = vmul.f32 %v1547, %v1565
        %v1570 = vmul.f32 %v1549, %v1566
        %v1571 = vmul.f32 %v1551, %v1567
        %v1572 = vpack.c.bf16 %v1568, %v1568
        %v1573 = vpack.c.bf16 %v1569, %v1569
        %v1574 = vpack.c.bf16 %v1570, %v1570
        %v1575 = vpack.c.bf16 %v1571, %v1571
        %v1577 = vsel %vm1343, %v1572, 0
        %vm1579 = vcmask 1043456
        %v1581 = vsel %vm1579, %v1339, 0
        %1583 = vmatprep.subr.bf16.mxu0 0
        %1584 = vmatpush1.bf16.msra.mxu0 0
        %1585 = vmatprep.subr.bf16.mxu0 0
        %1586 = vmatpush1.bf16.msra.mxu0 0
        %1587 = vmatprep.subr.bf16.mxu0 0
        %1588 = vmatpush1.bf16.msra.mxu0 0
        %1589 = vmatprep.subr.bf16.mxu0 0
        %1590 = vmatpush1.bf16.msra.mxu0 0
        %1591 = vmatprep.subr.bf16.mxu0 0
        %1592 = vmatpush1.bf16.msra.mxu0 0
        %1593 = vmatprep.subr.bf16.mxu0 0
        %1594 = vmatpush1.bf16.msra.mxu0 0
        %1595 = vmatprep.subr.bf16.mxu0 0
        %1596 = vmatpush1.bf16.msra.mxu0 0
        %1597 = vmatprep.subr.bf16.mxu0 0
        %1598 = vmatpush1.bf16.msra.mxu0 %v1581
        %1599 = vmatprep.subr.bf16.mxu0 0
        %1600 = vmatpush2.bf16.msra.mxu0 0
        %1601 = vmatprep.subr.bf16.mxu0 0
        %1602 = vmatpush2.bf16.msra.mxu0 0
        %1603 = vmatprep.subr.bf16.mxu0 0
        %1604 = vmatpush2.bf16.msra.mxu0 0
        %1605 = vmatprep.subr.bf16.mxu0 0
        %1606 = vmatpush2.bf16.msra.mxu0 0
        %1607 = vmatprep.subr.bf16.mxu0 0
        %1608 = vmatpush2.bf16.msra.mxu0 0
        %1609 = vmatprep.subr.bf16.mxu0 0
        %1610 = vmatpush2.bf16.msra.mxu0 0
        %1611 = vmatprep.subr.bf16.mxu0 0
        %1612 = vmatpush2.bf16.msra.mxu0 0
        %1613 = vmatprep.subr.bf16.mxu0 0
        %1614 = vmatpush2.bf16.msra.mxu0 0
        %1615 = vmatprep.mubr.bf16.mxu0 0
        %1616 = vmatmul.mubr.bf16.gmra.mxu0 %v1577
        %v1617 = vpop.f32.mrf.mxu0
        %v1618 = vadd.f32 0.0, %v1617
        %v1619 = vpop.f32.mrf.mxu0
        %v1620 = vpop.f32.mrf.mxu0
        %v1621 = vpop.f32.mrf.mxu0
        %1622 = vdwg.mxu0
        %v1624 = vsel %vm1343, %v1573, 0
        %v1627 = vsel %vm1579, %v1340, 0
        %1629 = vmatprep.subr.bf16.mxu0 0
        %1630 = vmatpush1.bf16.msra.mxu0 0
        %1631 = vmatprep.subr.bf16.mxu0 0
        %1632 = vmatpush1.bf16.msra.mxu0 0
        %1633 = vmatprep.subr.bf16.mxu0 0
        %1634 = vmatpush1.bf16.msra.mxu0 0
        %1635 = vmatprep.subr.bf16.mxu0 0
        %1636 = vmatpush1.bf16.msra.mxu0 0
        %1637 = vmatprep.subr.bf16.mxu0 0
        %1638 = vmatpush1.bf16.msra.mxu0 0
        %1639 = vmatprep.subr.bf16.mxu0 0
        %1640 = vmatpush1.bf16.msra.mxu0 0
        %1641 = vmatprep.subr.bf16.mxu0 0
        %1642 = vmatpush1.bf16.msra.mxu0 0
        %1643 = vmatprep.subr.bf16.mxu0 0
        %1644 = vmatpush1.bf16.msra.mxu0 %v1627
        %1645 = vmatprep.subr.bf16.mxu0 0
        %1646 = vmatpush2.bf16.msra.mxu0 0
        %1647 = vmatprep.subr.bf16.mxu0 0
        %1648 = vmatpush2.bf16.msra.mxu0 0
        %1649 = vmatprep.subr.bf16.mxu0 0
        %1650 = vmatpush2.bf16.msra.mxu0 0
        %1651 = vmatprep.subr.bf16.mxu0 0
        %1652 = vmatpush2.bf16.msra.mxu0 0
        %1653 = vmatprep.subr.bf16.mxu0 0
        %1654 = vmatpush2.bf16.msra.mxu0 0
        %1655 = vmatprep.subr.bf16.mxu0 0
        %1656 = vmatpush2.bf16.msra.mxu0 0
        %1657 = vmatprep.subr.bf16.mxu0 0
        %1658 = vmatpush2.bf16.msra.mxu0 0
        %1659 = vmatprep.subr.bf16.mxu0 0
        %1660 = vmatpush2.bf16.msra.mxu0 0
        %1661 = vmatprep.mubr.bf16.mxu0 0
        %1662 = vmatmul.mubr.bf16.gmra.mxu0 %v1624
        %v1663 = vpop.f32.mrf.mxu0
        %v1664 = vadd.f32 0.0, %v1663
        %v1665 = vpop.f32.mrf.mxu0
        %v1666 = vpop.f32.mrf.mxu0
        %v1667 = vpop.f32.mrf.mxu0
        %1668 = vdwg.mxu0
        %v1670 = vsel %vm1343, %v1574, 0
        %v1673 = vsel %vm1579, %v1341, 0
        %1675 = vmatprep.subr.bf16.mxu0 0
        %1676 = vmatpush1.bf16.msra.mxu0 0
        %1677 = vmatprep.subr.bf16.mxu0 0
        %1678 = vmatpush1.bf16.msra.mxu0 0
        %1679 = vmatprep.subr.bf16.mxu0 0
        %1680 = vmatpush1.bf16.msra.mxu0 0
        %1681 = vmatprep.subr.bf16.mxu0 0
        %1682 = vmatpush1.bf16.msra.mxu0 0
        %1683 = vmatprep.subr.bf16.mxu0 0
        %1684 = vmatpush1.bf16.msra.mxu0 0
        %1685 = vmatprep.subr.bf16.mxu0 0
        %1686 = vmatpush1.bf16.msra.mxu0 0
        %1687 = vmatprep.subr.bf16.mxu0 0
        %1688 = vmatpush1.bf16.msra.mxu0 0
        %1689 = vmatprep.subr.bf16.mxu0 0
        %1690 = vmatpush1.bf16.msra.mxu0 %v1673
        %1691 = vmatprep.subr.bf16.mxu0 0
        %1692 = vmatpush2.bf16.msra.mxu0 0
        %1693 = vmatprep.subr.bf16.mxu0 0
        %1694 = vmatpush2.bf16.msra.mxu0 0
        %1695 = vmatprep.subr.bf16.mxu0 0
        %1696 = vmatpush2.bf16.msra.mxu0 0
        %1697 = vmatprep.subr.bf16.mxu0 0
        %1698 = vmatpush2.bf16.msra.mxu0 0
        %1699 = vmatprep.subr.bf16.mxu0 0
        %1700 = vmatpush2.bf16.msra.mxu0 0
        %1701 = vmatprep.subr.bf16.mxu0 0
        %1702 = vmatpush2.bf16.msra.mxu0 0
        %1703 = vmatprep.subr.bf16.mxu0 0
        %1704 = vmatpush2.bf16.msra.mxu0 0
        %1705 = vmatprep.subr.bf16.mxu0 0
        %1706 = vmatpush2.bf16.msra.mxu0 0
        %1707 = vmatprep.mubr.bf16.mxu0 0
        %1708 = vmatmul.mubr.bf16.gmra.mxu0 %v1670
        %v1709 = vpop.f32.mrf.mxu0
        %v1710 = vadd.f32 0.0, %v1709
        %v1711 = vpop.f32.mrf.mxu0
        %v1712 = vpop.f32.mrf.mxu0
        %v1713 = vpop.f32.mrf.mxu0
        %1714 = vdwg.mxu0
        %v1716 = vsel %vm1343, %v1575, 0
        %v1719 = vsel %vm1579, %v1342, 0
        %1721 = vmatprep.subr.bf16.mxu0 0
        %1722 = vmatpush1.bf16.msra.mxu0 0
        %1723 = vmatprep.subr.bf16.mxu0 0
        %1724 = vmatpush1.bf16.msra.mxu0 0
        %1725 = vmatprep.subr.bf16.mxu0 0
        %1726 = vmatpush1.bf16.msra.mxu0 0
        %1727 = vmatprep.subr.bf16.mxu0 0
        %1728 = vmatpush1.bf16.msra.mxu0 0
        %1729 = vmatprep.subr.bf16.mxu0 0
        %1730 = vmatpush1.bf16.msra.mxu0 0
        %1731 = vmatprep.subr.bf16.mxu0 0
        %1732 = vmatpush1.bf16.msra.mxu0 0
        %1733 = vmatprep.subr.bf16.mxu0 0
        %1734 = vmatpush1.bf16.msra.mxu0 0
        %1735 = vmatprep.subr.bf16.mxu0 0
        %1736 = vmatpush1.bf16.msra.mxu0 %v1719
        %1737 = vmatprep.subr.bf16.mxu0 0
        %1738 = vmatpush2.bf16.msra.mxu0 0
        %1739 = vmatprep.subr.bf16.mxu0 0
        %1740 = vmatpush2.bf16.msra.mxu0 0
        %1741 = vmatprep.subr.bf16.mxu0 0
        %1742 = vmatpush2.bf16.msra.mxu0 0
        %1743 = vmatprep.subr.bf16.mxu0 0
        %1744 = vmatpush2.bf16.msra.mxu0 0
        %1745 = vmatprep.subr.bf16.mxu0 0
        %1746 = vmatpush2.bf16.msra.mxu0 0
        %1747 = vmatprep.subr.bf16.mxu0 0
        %1748 = vmatpush2.bf16.msra.mxu0 0
        %1749 = vmatprep.subr.bf16.mxu0 0
        %1750 = vmatpush2.bf16.msra.mxu0 0
        %1751 = vmatprep.subr.bf16.mxu0 0
        %1752 = vmatpush2.bf16.msra.mxu0 0
        %1753 = vmatprep.mubr.bf16.mxu0 0
        %1754 = vmatmul.mubr.bf16.gmra.mxu0 %v1716
        %v1755 = vpop.f32.mrf.mxu0
        %v1756 = vadd.f32 0.0, %v1755
        %v1757 = vpop.f32.mrf.mxu0
        %v1758 = vpop.f32.mrf.mxu0
        %v1759 = vpop.f32.mrf.mxu0
        %1760 = vdwg.mxu0
        %v1761 = vcombine.low %v1618, %v1710
        %v1762 = vcombine.high %v1618, %v1710
        %v1764 = vunpack.c.l.s4 1983009808
        %v1765 = vunpack.c.0.s8 %v1764
        %v1766 = vlaneseq
        %v1767 = vshrl.u32 %v1766, 7
        %v1768 = vsub.s32 %v1765, %v1767
        %v1769 = vrot.slane %v1761, %v1768
        %v1771 = vunpack.c.l.s4 1983009808
        %v1772 = vunpack.c.0.s8 %v1771
        %v1773 = vlaneseq
        %v1774 = vshrl.u32 %v1773, 7
        %v1775 = vsub.s32 %v1772, %v1774
        %v1776 = vrot.slane %v1762, %v1775
        %v1777 = vcombine.low %v1664, %v1756
        %v1778 = vcombine.high %v1664, %v1756
        %v1780 = vunpack.c.l.s4 1983009808
        %v1781 = vunpack.c.0.s8 %v1780
        %v1782 = vlaneseq
        %v1783 = vshrl.u32 %v1782, 7
        %v1784 = vsub.s32 %v1781, %v1783
        %v1785 = vrot.slane %v1777, %v1784
        %v1787 = vunpack.c.l.s4 1983009808
        %v1788 = vunpack.c.0.s8 %v1787
        %v1789 = vlaneseq
        %v1790 = vshrl.u32 %v1789, 7
        %v1791 = vsub.s32 %v1788, %v1790
        %v1792 = vrot.slane %v1778, %v1791
        %v1793 = vcombine.low %v1769, %v1785
        %v1794 = vcombine.high %v1769, %v1785
        %v1796 = vunpack.c.l.s4 1934713408
        %v1797 = vunpack.c.0.s8 %v1796
        %v1798 = vlaneseq
        %v1799 = vshrl.u32 %v1798, 7
        %v1800 = vsub.s32 %v1797, %v1799
        %v1801 = vrot.slane %v1793, %v1800
        %v1803 = vunpack.c.l.s4 1934713408
        %v1804 = vunpack.c.0.s8 %v1803
        %v1805 = vlaneseq
        %v1806 = vshrl.u32 %v1805, 7
        %v1807 = vsub.s32 %v1804, %v1806
        %v1808 = vrot.slane %v1794, %v1807
        %v1809 = vcombine.low %v1776, %v1792
        %v1810 = vcombine.high %v1776, %v1792
        %v1812 = vunpack.c.l.s4 1934713408
        %v1813 = vunpack.c.0.s8 %v1812
        %v1814 = vlaneseq
        %v1815 = vshrl.u32 %v1814, 7
        %v1816 = vsub.s32 %v1813, %v1815
        %v1817 = vrot.slane %v1809, %v1816
        %v1819 = vunpack.c.l.s4 1934713408
        %v1820 = vunpack.c.0.s8 %v1819
        %v1821 = vlaneseq
        %v1822 = vshrl.u32 %v1821, 7
        %v1823 = vsub.s32 %v1820, %v1822
        %v1824 = vrot.slane %v1810, %v1823
        %v1825 = vcombine.high %v1801, 0.0
        %v1826 = vcombine.high %v1808, 0.0
        %v1827 = vcombine.high %v1817, 0.0
        %v1828 = vcombine.high %v1824, 0.0
        %v1829 = vcombine.low %v1801, %v1808
        %v1831 = vunpack.c.l.s4 1983009808
        %v1832 = vunpack.c.0.s8 %v1831
        %v1833 = vlaneseq
        %v1834 = vshrl.u32 %v1833, 7
        %v1835 = vsub.s32 %v1832, %v1834
        %v1836 = vrot.slane %v1829, %v1835
        %v1837 = vcombine.low %v1825, %v1826
        %v1839 = vunpack.c.l.s4 1983009808
        %v1840 = vunpack.c.0.s8 %v1839
        %v1841 = vlaneseq
        %v1842 = vshrl.u32 %v1841, 7
        %v1843 = vsub.s32 %v1840, %v1842
        %v1844 = vrot.slane %v1837, %v1843
        %v1845 = vcombine.low %v1817, %v1824
        %v1847 = vunpack.c.l.s4 1983009808
        %v1848 = vunpack.c.0.s8 %v1847
        %v1849 = vlaneseq
        %v1850 = vshrl.u32 %v1849, 7
        %v1851 = vsub.s32 %v1848, %v1850
        %v1852 = vrot.slane %v1845, %v1851
        %v1853 = vcombine.low %v1827, %v1828
        %v1855 = vunpack.c.l.s4 1983009808
        %v1856 = vunpack.c.0.s8 %v1855
        %v1857 = vlaneseq
        %v1858 = vshrl.u32 %v1857, 7
        %v1859 = vsub.s32 %v1856, %v1858
        %v1860 = vrot.slane %v1853, %v1859
        %v1861 = vcombine.low %v1836, %v1844
        %v1862 = vcombine.high %v1836, %v1844
        %v1864 = vunpack.c.l.s4 1934713408
        %v1865 = vunpack.c.0.s8 %v1864
        %v1866 = vlaneseq
        %v1867 = vshrl.u32 %v1866, 7
        %v1868 = vsub.s32 %v1865, %v1867
        %v1869 = vrot.slane %v1861, %v1868
        %v1871 = vunpack.c.l.s4 1934713408
        %v1872 = vunpack.c.0.s8 %v1871
        %v1873 = vlaneseq
        %v1874 = vshrl.u32 %v1873, 7
        %v1875 = vsub.s32 %v1872, %v1874
        %v1876 = vrot.slane %v1862, %v1875
        %v1877 = vcombine.low %v1852, %v1860
        %v1878 = vcombine.high %v1852, %v1860
        %v1880 = vunpack.c.l.s4 1934713408
        %v1881 = vunpack.c.0.s8 %v1880
        %v1882 = vlaneseq
        %v1883 = vshrl.u32 %v1882, 7
        %v1884 = vsub.s32 %v1881, %v1883
        %v1885 = vrot.slane %v1877, %v1884
        %v1887 = vunpack.c.l.s4 1934713408
        %v1888 = vunpack.c.0.s8 %v1887
        %v1889 = vlaneseq
        %v1890 = vshrl.u32 %v1889, 7
        %v1891 = vsub.s32 %v1888, %v1890
        %v1892 = vrot.slane %v1878, %v1891
        %v1893 = vcombine.low %v1869, %v1885
        %v1894 = vcombine.high %v1869, %v1885
        %v1895 = vcombine.low %v1876, %v1892
        %v1896 = vcombine.high %v1876, %v1892
        %1898 = vrot.lane.b32.xlu0 %v1894, 8
        %v1899 = vpop.permute.xlu0 %1898
        %1902 = vrot.lane.b32.xlu0 %v1895, 16
        %v1903 = vpop.permute.xlu0 %1902
        %1906 = vrot.lane.b32.xlu0 %v1896, 24
        %v1907 = vpop.permute.xlu0 %1906
        %v1909 = vsel %vm1343, %v1893, %v1899
        %vm1910 = vcmask 130048
        %v1911 = vsel %vm1910, %v1909, %v1903
        %vm1912 = vcmask 195584
        %v1913 = vsel %vm1912, %v1911, %v1907
        %v1914 = vpack.c.bf16 %v1913, %v1913
        %v1915 = vld [vmem:[#allocation2] sm:$0xf]
        %v1916 = vld [vmem:[#allocation2 + $0x4] sm:$0xf]
        %v1917 = vld [vmem:[#allocation2 + $0x8] sm:$0xf]
        %v1918 = vld [vmem:[#allocation2 + $0xc] sm:$0xf]
        %v1919 = vld [vmem:[%s11] sm:$0x1]
        %v1921 = vlaneseq
        %v1922 = vshrl.u32 %v1921, 7
        %v1923 = vsub.s32 0, %v1922
        %v1924 = vrot.slane %v1919, %v1923
        %v1930 = vunpack.c.l.b16 %v1915
        %v1931 = vunpack.c.l.b16 %v1916
        %v1932 = vunpack.c.l.b16 %v1917
        %v1933 = vunpack.c.l.b16 %v1918
        %v1934 = vpack.c.b16 %v1931, %v1930
        %v1935 = vpack.c.b16 %v1933, %v1932
        %v1939 = vsel %vm648, %v1914, 0
        %1941 = vmatprep.subr.bf16.mxu0 0
        %1942 = vmatpush1.bf16.msra.mxu0 0
        %1943 = vmatprep.subr.bf16.mxu0 0
        %1944 = vmatpush1.bf16.msra.mxu0 0
        %1945 = vmatprep.subr.bf16.mxu0 0
        %1946 = vmatpush1.bf16.msra.mxu0 0
        %1947 = vmatprep.subr.bf16.mxu0 0
        %1948 = vmatpush1.bf16.msra.mxu0 0
        %1949 = vmatprep.subr.bf16.mxu0 0
        %1950 = vmatpush1.bf16.msra.mxu0 0
        %1951 = vmatprep.subr.bf16.mxu0 0
        %1952 = vmatpush1.bf16.msra.mxu0 0
        %1953 = vmatprep.subr.bf16.mxu0 0
        %1954 = vmatpush1.bf16.msra.mxu0 %v1935
        %1955 = vmatprep.subr.bf16.mxu0 0
        %1956 = vmatpush1.bf16.msra.mxu0 %v1934
        %1957 = vmatprep.subr.bf16.mxu0 0
        %1958 = vmatpush2.bf16.msra.mxu0 0
        %1959 = vmatprep.subr.bf16.mxu0 0
        %1960 = vmatpush2.bf16.msra.mxu0 0
        %1961 = vmatprep.subr.bf16.mxu0 0
        %1962 = vmatpush2.bf16.msra.mxu0 0
        %1963 = vmatprep.subr.bf16.mxu0 0
        %1964 = vmatpush2.bf16.msra.mxu0 0
        %1965 = vmatprep.subr.bf16.mxu0 0
        %1966 = vmatpush2.bf16.msra.mxu0 0
        %1967 = vmatprep.subr.bf16.mxu0 0
        %1968 = vmatpush2.bf16.msra.mxu0 0
        %1969 = vmatprep.subr.bf16.mxu0 0
        %1970 = vmatpush2.bf16.msra.mxu0 0
        %1971 = vmatprep.subr.bf16.mxu0 0
        %1972 = vmatpush2.bf16.msra.mxu0 0
        %1973 = vmatprep.mubr.bf16.mxu0 0
        %1974 = vmatmul.mubr.bf16.gmra.mxu0 %v1939
        %v1975 = vpop.f32.mrf.mxu0
        %v1976 = vadd.f32 %v1924, %v1975
        %v1977 = vpop.f32.mrf.mxu0
        %v1978 = vpop.f32.mrf.mxu0
        %v1979 = vpop.f32.mrf.mxu0
        %1980 = vdwg.mxu0
        %v1981 = vadd.f32 %v644, %v1976
        %v1982 = vld [vmem:[%s12] sm:$0x1]
        %v1983 = vld [vmem:[%s13] sm:$0x1]
        %v1984 = vsel %vm648, %v1981, 0.0
        %1985 = vadd.xlane.f32.xlu0 %v1984
        %v1986 = vpop.xlane.xlu0 %1985
        %v1987 = vmul.f32 %v1986, %v652
        %v1988 = vsub.f32 %v1981, %v1987
        %v1989 = vmul.f32 %v1988, %v1988
        %v1990 = vsel %vm648, %v1989, 0.0
        %1991 = vadd.xlane.f32.xlu0 %v1990
        %v1992 = vpop.xlane.xlu0 %1991
        %v1993 = vmul.f32 %v1992, %v652
        %v1994 = vadd.f32 %v1993, 1e-05
        %v1995 = vrsqrt.pop %v1994
        %v1996 = vmul.f32 %v1988, %v1995
        %v1998 = vlaneseq
        %v1999 = vshrl.u32 %v1998, 7
        %v2000 = vsub.s32 0, %v1999
        %v2001 = vrot.slane %v1982, %v2000
        %v2003 = vmul.f32 %v1996, %v2001
        %v2005 = vlaneseq
        %v2006 = vshrl.u32 %v2005, 7
        %v2007 = vsub.s32 0, %v2006
        %v2008 = vrot.slane %v1983, %v2007
        %v2010 = vadd.f32 %v2003, %v2008
        %v2011 = vpack.c.bf16 %v2010, %v2010
        %v2012 = vld [vmem:[#allocation5] sm:$0xf]
        %v2013 = vld [vmem:[#allocation5 + $0x4] sm:$0xf]
        %v2014 = vld [vmem:[#allocation5 + $0x8] sm:$0xf]
        %v2015 = vld [vmem:[#allocation5 + $0xc] sm:$0xf]
        %v2016 = vld [vmem:[%s15] sm:$0x1]
        %v2018 = vlaneseq
        %v2019 = vshrl.u32 %v2018, 7
        %v2020 = vsub.s32 0, %v2019
        %v2021 = vrot.slane %v2016, %v2020
        %v2027 = vunpack.c.l.b16 %v2012
        %v2028 = vunpack.c.l.b16 %v2013
        %v2029 = vunpack.c.l.b16 %v2014
        %v2030 = vunpack.c.l.b16 %v2015
        %v2031 = vpack.c.b16 %v2028, %v2027
        %v2032 = vpack.c.b16 %v2030, %v2029
        %v2036 = vsel %vm648, %v2011, 0
        %2038 = vmatprep.subr.bf16.mxu0 0
        %2039 = vmatpush1.bf16.msra.mxu0 0
        %2040 = vmatprep.subr.bf16.mxu0 0
        %2041 = vmatpush1.bf16.msra.mxu0 0
        %2042 = vmatprep.subr.bf16.mxu0 0
        %2043 = vmatpush1.bf16.msra.mxu0 0
        %2044 = vmatprep.subr.bf16.mxu0 0
        %2045 = vmatpush1.bf16.msra.mxu0 0
        %2046 = vmatprep.subr.bf16.mxu0 0
        %2047 = vmatpush1.bf16.msra.mxu0 0
        %2048 = vmatprep.subr.bf16.mxu0 0
        %2049 = vmatpush1.bf16.msra.mxu0 0
        %2050 = vmatprep.subr.bf16.mxu0 0
        %2051 = vmatpush1.bf16.msra.mxu0 %v2032
        %2052 = vmatprep.subr.bf16.mxu0 0
        %2053 = vmatpush1.bf16.msra.mxu0 %v2031
        %2054 = vmatprep.subr.bf16.mxu0 0
        %2055 = vmatpush2.bf16.msra.mxu0 0
        %2056 = vmatprep.subr.bf16.mxu0 0
        %2057 = vmatpush2.bf16.msra.mxu0 0
        %2058 = vmatprep.subr.bf16.mxu0 0
        %2059 = vmatpush2.bf16.msra.mxu0 0
        %2060 = vmatprep.subr.bf16.mxu0 0
        %2061 = vmatpush2.bf16.msra.mxu0 0
        %2062 = vmatprep.subr.bf16.mxu0 0
        %2063 = vmatpush2.bf16.msra.mxu0 0
        %2064 = vmatprep.subr.bf16.mxu0 0
        %2065 = vmatpush2.bf16.msra.mxu0 0
        %2066 = vmatprep.subr.bf16.mxu0 0
        %2067 = vmatpush2.bf16.msra.mxu0 0
        %2068 = vmatprep.subr.bf16.mxu0 0
        %2069 = vmatpush2.bf16.msra.mxu0 0
        %2070 = vmatprep.mubr.bf16.mxu0 0
        %2071 = vmatmul.mubr.bf16.gmra.mxu0 %v2036
        %v2072 = vpop.f32.mrf.mxu0
        %v2073 = vadd.f32 %v2021, %v2072
        %v2074 = vpop.f32.mrf.mxu0
        %v2075 = vpop.f32.mrf.mxu0
        %v2076 = vpop.f32.mrf.mxu0
        %2077 = vdwg.mxu0
        %v2078 = vmul.f32 %v2073, 0.5
        %v2079 = vmul.f32 %v2073, 0.044715
        %v2080 = vmul.f32 %v2079, %v2073
        %v2081 = vmul.f32 %v2080, %v2073
        %v2082 = vadd.f32 %v2073, %v2081
        %v2083 = vmul.f32 %v2082, 0.7978846
        %v2084 = vtanh.pop %v2083
        %v2085 = vadd.f32 %v2084, 1.0
        %v2086 = vmul.f32 %v2078, %v2085
        %v2087 = vpack.c.bf16 %v2086, %v2086
        %v2088 = vld [vmem:[%s16] sm:$0xf]
        %v2089 = vld [vmem:[%s16 + $0x4] sm:$0xf]
        %v2090 = vld [vmem:[%s16 + $0x8] sm:$0xf]
        %v2091 = vld [vmem:[%s16 + $0xc] sm:$0xf]
        %v2092 = vld [vmem:[%s16 + $0x10] sm:$0xf]
        %v2093 = vld [vmem:[%s16 + $0x14] sm:$0xf]
        %v2094 = vld [vmem:[%s16 + $0x18] sm:$0xf]
        %v2095 = vld [vmem:[%s16 + $0x1c] sm:$0xf]
        %v2096 = vld [vmem:[%s16 + $0x20] sm:$0xf]
        %v2097 = vld [vmem:[%s16 + $0x24] sm:$0xf]
        %v2098 = vld [vmem:[%s16 + $0x28] sm:$0xf]
        %v2099 = vld [vmem:[%s16 + $0x2c] sm:$0xf]
        %v2100 = vld [vmem:[%s16 + $0x30] sm:$0xf]
        %v2101 = vld [vmem:[%s16 + $0x34] sm:$0xf]
        %v2102 = vld [vmem:[%s16 + $0x38] sm:$0xf]
        %v2103 = vld [vmem:[%s16 + $0x3c] sm:$0xf]
        %v2104 = vld [vmem:[%s17] sm:$0x1]
        %v2106 = vlaneseq
        %v2107 = vshrl.u32 %v2106, 7
        %v2108 = vsub.s32 0, %v2107
        %v2109 = vrot.slane %v2104, %v2108
        %v2127 = vunpack.c.l.b16 %v2088
        %v2128 = vunpack.c.l.b16 %v2089
        %v2129 = vunpack.c.l.b16 %v2090
        %v2130 = vunpack.c.l.b16 %v2091
        %v2131 = vunpack.c.l.b16 %v2092
        %v2132 = vunpack.c.l.b16 %v2093
        %v2133 = vunpack.c.l.b16 %v2094
        %v2134 = vunpack.c.l.b16 %v2095
        %v2135 = vunpack.c.l.b16 %v2096
        %v2136 = vunpack.c.l.b16 %v2097
        %v2137 = vunpack.c.l.b16 %v2098
        %v2138 = vunpack.c.l.b16 %v2099
        %v2139 = vunpack.c.l.b16 %v2100
        %v2140 = vunpack.c.l.b16 %v2101
        %v2141 = vunpack.c.l.b16 %v2102
        %v2142 = vunpack.c.l.b16 %v2103
        %v2143 = vpack.c.b16 %v2128, %v2127
        %v2144 = vpack.c.b16 %v2130, %v2129
        %v2145 = vpack.c.b16 %v2132, %v2131
        %v2146 = vpack.c.b16 %v2134, %v2133
        %v2147 = vpack.c.b16 %v2136, %v2135
        %v2148 = vpack.c.b16 %v2138, %v2137
        %v2149 = vpack.c.b16 %v2140, %v2139
        %v2150 = vpack.c.b16 %v2142, %v2141
        %2159 = vmatprep.subr.bf16.mxu0 0
        %2160 = vmatpush1.bf16.msra.mxu0 %v2150
        %2161 = vmatprep.subr.bf16.mxu0 0
        %2162 = vmatpush1.bf16.msra.mxu0 %v2149
        %2163 = vmatprep.subr.bf16.mxu0 0
        %2164 = vmatpush1.bf16.msra.mxu0 %v2148
        %2165 = vmatprep.subr.bf16.mxu0 0
        %2166 = vmatpush1.bf16.msra.mxu0 %v2147
        %2167 = vmatprep.subr.bf16.mxu0 0
        %2168 = vmatpush1.bf16.msra.mxu0 %v2146
        %2169 = vmatprep.subr.bf16.mxu0 0
        %2170 = vmatpush1.bf16.msra.mxu0 %v2145
        %2171 = vmatprep.subr.bf16.mxu0 0
        %2172 = vmatpush1.bf16.msra.mxu0 %v2144
        %2173 = vmatprep.subr.bf16.mxu0 0
        %2174 = vmatpush1.bf16.msra.mxu0 %v2143
        %2175 = vmatprep.subr.bf16.mxu0 0
        %2176 = vmatpush2.bf16.msra.mxu0 0
        %2177 = vmatprep.subr.bf16.mxu0 0
        %2178 = vmatpush2.bf16.msra.mxu0 0
        %2179 = vmatprep.subr.bf16.mxu0 0
        %2180 = vmatpush2.bf16.msra.mxu0 0
        %2181 = vmatprep.subr.bf16.mxu0 0
        %2182 = vmatpush2.bf16.msra.mxu0 0
        %2183 = vmatprep.subr.bf16.mxu0 0
        %2184 = vmatpush2.bf16.msra.mxu0 0
        %2185 = vmatprep.subr.bf16.mxu0 0
        %2186 = vmatpush2.bf16.msra.mxu0 0
        %2187 = vmatprep.subr.bf16.mxu0 0
        %2188 = vmatpush2.bf16.msra.mxu0 0
        %2189 = vmatprep.subr.bf16.mxu0 0
        %2190 = vmatpush2.bf16.msra.mxu0 0
        %2191 = vmatprep.mubr.bf16.mxu0 0
        %2192 = vmatmul.mubr.bf16.gmra.mxu0 %v2087
        %v2193 = vpop.f32.mrf.mxu0
        %v2194 = vadd.f32 %v2109, %v2193
        %v2195 = vpop.f32.mrf.mxu0
        %v2196 = vpop.f32.mrf.mxu0
        %v2197 = vpop.f32.mrf.mxu0
        %2198 = vdwg.mxu0
        %v2199 = vadd.f32 %v1981, %v2194
        %2200 = vst.msk [vmem:[%s631] sm:$0xff] %vm648, %v2199
        %s2201 = sand.u32 %s446, 1
        %s2202 = scalar_lea.sflag [#allocation4], %s2201
        %s2203 = sand.u32 %s446, 1
        %s2204 = smul.addr %s2203, 8
        %s2205 = scalar_lea.vmem [#allocation7], %s2204
        // Predicated region
        $region101: #{tpu_custom_call.1} parent=91 // pred_check
          %p2206 = pneg %p456
        $region102: #{tpu_custom_call.1} parent=91 // pred_check_branch
          %2208 = sbr.rel (%p2206) target = $region104
        $region103: #{tpu_custom_call.1} parent=91 // pred_region
          %s2210 = ssub.s32 128, 128
          %2211 = vsyncadd %s2202, %s2210
          %s2212 = sadd.s32 %s39, %s38
          %s2213 = smul.addr %s2212, 128
          %s2214 = scalar_lea.hbm %s18, %s2213
          %s2216 = sshll.u32 %s2205, 4
          %s2217 = int_to_ptr.vmem [resolvable:$true] %s2216
          %2219 = dma.vmem_to_hbm [thread:$0]  %s2217, 128, %s2214, %s2202
        $region104: #{tpu_custom_call.1} parent=91 // pred_fallthru
          _
      $region92: #{tpu_custom_call.1} parent=5 // pred_fallthru
        _
      %p2220 = scmp.le.s32.totalorder 2, %s29
      // Predicated region
      $region105: #{tpu_custom_call.1} parent=5 // pred_check
        %p2221 = pneg %p2220
      $region106: #{tpu_custom_call.1} parent=5 // pred_check_branch
        %2223 = sbr.rel (%p2221) target = $region108
      $region107: #{tpu_custom_call.1} parent=5 // pred_region
        %s2224 = ssub.s32 %s29, 2
        // Predicated region
        $region109: #{tpu_custom_call.1} parent=107 // pred_check
          %p2225 = pneg %p462
        $region110: #{tpu_custom_call.1} parent=107 // pred_check_branch
          %2227 = sbr.rel (%p2225) target = $region112
        $region111: #{tpu_custom_call.1} parent=107 // pred_region
          %s2228 = sand.u32 %s447, 1
          %s2229 = scalar_lea.sflag [#allocation4], %s2228
          %s2230 = sand.u32 %s447, 1
          %s2231 = smul.addr %s2230, 8
          %s2232 = scalar_lea.vmem [#allocation7], %s2231
          %2233 = dma.done %s2229, 128
        $region112: #{tpu_custom_call.1} parent=107 // pred_fallthru
          _
      $region108: #{tpu_custom_call.1} parent=5 // pred_fallthru
        _
    $region6: #{tpu_custom_call.1} parent=1 // loop_footer
      %s33 = sadd.s32 1, %s29
    $region7: #{tpu_custom_call.1} parent=1 // loop_footer_branch
      %28 = sbr.rel target = $region3
    $region8: #{tpu_custom_call.1} parent=1 // loop_exit
      _
    %2234 = vsyncpa [#allocation3], 1
    %s2235 = scalar_lea.sflag [#allocation3], 1
    %2236 = vsyncpa %s2235, 1
    %2237 = vsyncpa [#allocation6], 1
    %2238 = vsyncpa [#allocation4], 1
    %s2239 = scalar_lea.sflag [#allocation4], 1
    %2240 = vsyncpa %s2239, 1

</llo_original>
